<compile_context>
chip_gen: v7x
topology: tpu7x:2x2x1
jax: 0.10.0
libtpu: 0.0.40
codegen_flags: <defaults>
</compile_context>

<pallas_src>
import math
import functools

import jax
import jax.numpy as jnp
from jax import lax
from jax.experimental import pallas as pl
from jax.experimental.pallas import tpu as pltpu


def _fourier_matmul_kernel(x_ref, w_ref, o_ref):
    """x_ref: (TILE_P, F*D*2) flattened factor tile (lane-dense).
       w_ref: (F*D*2, D) folded sin/cos/mask/(1/max_degree) scatter matrix.
       o_ref: (TILE_P, D) float32 output tile."""
    o_ref[...] = jnp.dot(
        x_ref[...],
        w_ref[...],
        preferred_element_type=jnp.float32,
        precision=lax.Precision.HIGHEST,  # true f32 accumulation on the MXU
    )


def _build_weight_matrix(timestamp, degree, max_degree, D, hz_base):
    """W[f*D*2 + d*2 + c, e] = (d == e) * mask(f) * {sin,cos}(2*hz_base*t*f) / max_degree."""
    f = jnp.arange(max_degree, dtype=jnp.float32)
    ang = f * (2.0 * hz_base) * timestamp
    scale = (jnp.arange(max_degree) < degree).astype(jnp.float32) * (1.0 / max_degree)
    sin_w = jnp.sin(ang) * scale                       # (F,)
    cos_w = jnp.cos(ang) * scale                       # (F,)
    sc = jnp.stack([sin_w, cos_w], axis=-1)            # (F, 2)
    eye = jnp.eye(D, dtype=jnp.float32)                # (D, D)
    w = jnp.einsum("fc,de->fdce", sc, eye)             # (F, D, 2, D)
    return w.reshape(max_degree * D * 2, D)


@functools.partial(
    jax.jit, static_argnames=("max_degree", "hz_base_factor", "tile_p")
)
def fourier_forward(factors, timestamp, degree, *, max_degree,
                    hz_base_factor=1.0, tile_p=1024):
    """factors: (P, max_degree, D, 2) float32; returns (P, D) float32."""
    P, F, D, two = factors.shape
    assert F == max_degree and two == 2
    hz_base = hz_base_factor * math.pi

    K = F * D * 2
    # Free (contiguous) reshape: no extra HBM pass, unlike factors[..., 0/1].
    x = factors.reshape(P, K)

    w = _build_weight_matrix(
        jnp.asarray(timestamp, jnp.float32),
        jnp.asarray(degree, jnp.int32),
        max_degree, D, hz_base,
    )

    # Tile over P.  If P fits in one tile take it whole (block == full dim is
    # always legal); otherwise use a sublane-aligned (multiple-of-8) tile.
    if P <= tile_p:
        tp = P
    else:
        tp = max(8, (tile_p // 8) * 8)
    grid = (pl.cdiv(P, tp),)

    cost = pl.CostEstimate(
        flops=2 * P * K * D,
        transcendentals=0,
        bytes_accessed=(P * K + K * D + P * D) * 4,
    )

    return pl.pallas_call(
        _fourier_matmul_kernel,
        out_shape=jax.ShapeDtypeStruct((P, D), jnp.float32),
        grid=grid,
        in_specs=[
            pl.BlockSpec((tp, K), lambda i: (i, 0)),   # streamed factor tiles
            pl.BlockSpec((K, D), lambda i: (0, 0)),    # weight matrix, resident
        ],
        out_specs=pl.BlockSpec((tp, D), lambda i: (i, 0)),
        compiler_params=pltpu.CompilerParams(
            dimension_semantics=("parallel",),          # shard P across TCs
            vmem_limit_bytes=32 * 1024 * 1024,
        ),
        cost_estimate=cost,
    )(x, w)


def fourier_reference(factors, timestamp, degree, *, max_degree, hz_base_factor=1.0):
    """Pure-JAX reference reproducing the Taichi fwd kernel + /max_degree."""
    hz_base = hz_base_factor * math.pi
    F = factors.shape[1]
    f = jnp.arange(F, dtype=jnp.float32)
    ang = f * 2.0 * hz_base * timestamp
    mask = jnp.arange(F) < degree
    sin_w = jnp.where(mask, jnp.sin(ang), 0.0)
    cos_w = jnp.where(mask, jnp.cos(ang), 0.0)
    fs = factors[..., 0]
    fc = factors[..., 1]
    out = (jnp.einsum("f,pfd->pd", sin_w, fs, precision="highest")
           + jnp.einsum("f,pfd->pd", cos_w, fc, precision="highest"))
    return out / max_degree


# TODO(synk): only the forward pass is implemented; the Taichi backward kernel
# (fft_kernel_bwd / autograd) is out of scope here.

if __name__ == "__main__":
    max_degree = 4
    P, D = 512, 32
    degree = 3
    timestamp = 0.37

    key = jax.random.PRNGKey(0)
    factors = jax.random.normal(key, (P, max_degree, D, 2), dtype=jnp.float32)

    # Small tile so the demo exercises a multi-step (grid=(4,)) pipelined run.
    out = fourier_forward(
        factors, timestamp, degree,
        max_degree=max_degree, hz_base_factor=1.0, tile_p=128,
    )
    out = jax.block_until_ready(out)

    ref = fourier_reference(
        factors, timestamp, degree, max_degree=max_degree, hz_base_factor=1.0
    )

    assert out.shape == (P, D) and out.dtype == jnp.float32
    assert jnp.allclose(out, ref, atol=1e-5, rtol=1e-5), "mismatch vs reference"
    print("KERNEL_OK")
</pallas_src>

<mosaic_0001>
module attributes {stable_mosaic.version = 11 : i64} {
  func.func @_fourier_matmul_kernel(%arg0: i32, %arg1: memref<128x256xf32, #tpu.memory_space<vmem>>, %arg2: memref<256x32xf32, #tpu.memory_space<vmem>>, %arg3: memref<128x32xf32, #tpu.memory_space<vmem>>) attributes {dimension_semantics = [#tpu.dimension_semantics<parallel>], iteration_bounds = array<i64: 4>, scalar_prefetch = 0 : i64, scratch_operands = 0 : i64, tpu.core_type = #tpu.core_type<tc>, window_params = [{transform_indices = @transform_0, window_bounds = array<i64: 128, 256>}, {pipeline_mode = #tpu.pipeline_mode<synchronous>, transform_indices = @transform_1, window_bounds = array<i64: 256, 32>}, {transform_indices = @transform_2, window_bounds = array<i64: 128, 32>}]} {
    %c0 = arith.constant 0 : index
    %c0_0 = arith.constant 0 : index
    %0 = vector.load %arg1[%c0, %c0_0] : memref<128x256xf32, #tpu.memory_space<vmem>>, vector<128x256xf32>
    %c0_1 = arith.constant 0 : index
    %c0_2 = arith.constant 0 : index
    %1 = vector.load %arg2[%c0_1, %c0_2] : memref<256x32xf32, #tpu.memory_space<vmem>>, vector<256x32xf32>
    %cst = arith.constant dense<0.000000e+00> : vector<128x32xf32>
    %2 = tpu.matmul %0, %1, %cst {dimension_numbers = #tpu.dot_dimension_numbers<[1], [0], [0], [1], [0, 0, 1, 1], [], []>, precision = #tpu.contract_precision<fp32>} : vector<128x256xf32>, vector<256x32xf32>, vector<128x32xf32> -> vector<128x32xf32>
    %c0_3 = arith.constant 0 : index
    %c0_4 = arith.constant 0 : index
    %3 = vector.load %arg3[%c0_3, %c0_4] : memref<128x32xf32, #tpu.memory_space<vmem>>, vector<128x32xf32>
    tpu.vector_store %arg3[%c0_3, %c0_4], %2 {strides = array<i32>} : memref<128x32xf32, #tpu.memory_space<vmem>>, vector<128x32xf32>,
    return
  }
  func.func @transform_0(%arg0: i32) -> (i32, i32) {
    %c0_i32 = arith.constant 0 : i32
    %c0_i32_0 = arith.constant 0 : i32
    return %arg0, %c0_i32 : i32, i32
  }
  func.func @transform_1(%arg0: i32) -> (i32, i32) {
    %c0_i32 = arith.constant 0 : i32
    %c0_i32_0 = arith.constant 0 : i32
    %c0_i32_1 = arith.constant 0 : i32
    return %c0_i32, %c0_i32_0 : i32, i32
  }
  func.func @transform_2(%arg0: i32) -> (i32, i32) {
    %c0_i32 = arith.constant 0 : i32
    %c0_i32_0 = arith.constant 0 : i32
    return %arg0, %c0_i32 : i32, i32
  }
}

</mosaic_0001>

<llo_original>
// kernel: fourier_forward.1
$region0: #{fourier_forward.1}
  #allocation0 [shape = 'u32[]', space=smem, size = 0x4, offset = 0x4, fixed_abs, tag = 'smem constant byte address 0x4 - core index']
  #allocation1 [shape = 'u32[144,128]{1,0:T(1,128)}', space=vmem, size = 0x12000, scoped, tag = 'internal scratch']
  %s0 = inlined_call_operand.vmem [shape: f32[512,256], index: 0, kind: input, shape index: {}]
  %s1 = inlined_call_operand.vmem [shape: f32[256,32], index: 1, kind: input, shape index: {}]
  %s2 = inlined_call_operand.vmem [shape: f32[512,32], index: 2, kind: output, shape index: {}]
  %s3 = sld [smem:[#allocation0]]
  $region41: #{fourier_forward.1} parent=0
    _
  %s5 = ssub.s32 1, %s3
  %s6 = scalar_select 0, %s5, %s3
  loop: start=0, step=1, limit=6
  $region2: #{fourier_forward.1} parent=0 // loop_pre_header
    _
  $region3: #{fourier_forward.1} parent=0 // loop_header
    %s8 = sphi 0, %s12
    %p9 = scmp.ge.s32.totalorder %s8, 6
    %s18 = sphi 0, %s20
    %s21 = sphi 0, %s18
    %s22 = sphi 0, %s21
    %s38 = sphi 0, %s22
    %s42 = sphi 0, %s42
    %s44 = sphi 0, %s42
    %s45 = sphi 0, %s44
    %s59 = sphi 0, %s45
    %s65 = sphi 0, %s67
    %s68 = sphi 0, %s65
    %s69 = sphi 0, %s68
    %s85 = sphi 0, %s69
  $region4: #{fourier_forward.1} parent=0 // loop_header_branch
    %11 = sbr.rel (%p9) target = $region8
  $region5: #{fourier_forward.1} parent=0 // loop_body
    %s13 = ssub.s32 %s8, 1
    %s14 = ssub.s32 %s8, 2
    %s15 = sadd.s32 %s8, 1
    %s16 = ssub.s32 %s8, %s15
    %p17 = scmp.eq.s32.totalorder %s16, 0
    %s19 = sadd.s32 %s18, 1
    %s20 = scalar_select %p17, %s18, %s19
    %p23 = pneg %p17
    %p24 = scmp.eq.s32.totalorder %s8, 3
    %p25 = por %p23, %p24
    %p26 = scmp.ne.s32.totalorder %s18, %s21
    %p27 = scmp.eq.s32.totalorder %s8, 0
    %p28 = por %p26, %p27
    %p29 = scmp.ne.s32.totalorder %s18, %s21
    %p30 = scmp.eq.s32.totalorder %s13, 3
    %p31 = por %p29, %p30
    %p32 = scmp.ne.s32.totalorder %s21, %s22
    %p33 = scmp.eq.s32.totalorder %s13, 0
    %p34 = por %p32, %p33
    %p35 = scmp.ne.s32.totalorder %s21, %s22
    %p36 = scmp.eq.s32.totalorder %s14, 3
    %p37 = por %p35, %p36
    %p39 = scmp.ne.s32.totalorder %s22, %s38
    %p40 = scmp.eq.s32.totalorder %s14, 0
    %p41 = por %p39, %p40
    %s43 = sadd.s32 %s42, 1
    %p46 = scmp.eq.s32.totalorder %s8, 3
    %p47 = scmp.ne.s32.totalorder %s42, %s44
    %p48 = scmp.eq.s32.totalorder %s8, 0
    %p49 = por %p47, %p48
    %p50 = scmp.ne.s32.totalorder %s42, %s44
    %p51 = scmp.eq.s32.totalorder %s13, 3
    %p52 = por %p50, %p51
    %p53 = scmp.ne.s32.totalorder %s44, %s45
    %p54 = scmp.eq.s32.totalorder %s13, 0
    %p55 = por %p53, %p54
    %p56 = scmp.ne.s32.totalorder %s44, %s45
    %p57 = scmp.eq.s32.totalorder %s14, 3
    %p58 = por %p56, %p57
    %p60 = scmp.ne.s32.totalorder %s45, %s59
    %p61 = scmp.eq.s32.totalorder %s14, 0
    %p62 = por %p60, %p61
    %s63 = ssub.s32 %s8, %s15
    %p64 = scmp.eq.s32.totalorder %s63, 0
    %s66 = sadd.s32 %s65, 1
    %s67 = scalar_select %p64, %s65, %s66
    %p70 = pneg %p64
    %p71 = scmp.eq.s32.totalorder %s8, 3
    %p72 = por %p70, %p71
    %p73 = scmp.ne.s32.totalorder %s65, %s68
    %p74 = scmp.eq.s32.totalorder %s8, 0
    %p75 = por %p73, %p74
    %p76 = scmp.ne.s32.totalorder %s65, %s68
    %p77 = scmp.eq.s32.totalorder %s13, 3
    %p78 = por %p76, %p77
    %p79 = scmp.ne.s32.totalorder %s68, %s69
    %p80 = scmp.eq.s32.totalorder %s13, 0
    %p81 = por %p79, %p80
    %p82 = scmp.ne.s32.totalorder %s68, %s69
    %p83 = scmp.eq.s32.totalorder %s14, 3
    %p84 = por %p82, %p83
    %p86 = scmp.ne.s32.totalorder %s69, %s85
    %p87 = scmp.eq.s32.totalorder %s14, 0
    %p88 = por %p86, %p87
    %p89 = scmp.le.s32.totalorder 1, %s8
    %p90 = scmp.lt.s32.totalorder %s8, 5
    %p91 = pnand %p89, %p90
    %p92 = pneg %p91
    // Predicated region
    $region9: #{fourier_forward.1} parent=5 // pred_check
      _
    $region10: #{fourier_forward.1} parent=5 // pred_check_branch
      %94 = sbr.rel (%p91) target = $region12
    $region11: #{fourier_forward.1} parent=5 // pred_region
      %s95 = ssub.s32 %s8, 1
      // Predicated region
      $region13: #{fourier_forward.1} parent=11 // pred_check
        %p96 = pneg %p55
      $region14: #{fourier_forward.1} parent=11 // pred_check_branch
        %98 = sbr.rel (%p96) target = $region16
      $region15: #{fourier_forward.1} parent=11 // pred_region
        _
      $region16: #{fourier_forward.1} parent=11 // pred_fallthru
        _
    $region12: #{fourier_forward.1} parent=5 // pred_fallthru
      _
    %p99 = scmp.lt.s32.totalorder %s8, 4
    // Predicated region
    $region17: #{fourier_forward.1} parent=5 // pred_check
      %p100 = pneg %p99
    $region18: #{fourier_forward.1} parent=5 // pred_check_branch
      %102 = sbr.rel (%p100) target = $region20
    $region19: #{fourier_forward.1} parent=5 // pred_region
      // Predicated region
      $region21: #{fourier_forward.1} parent=19 // pred_check
        %p103 = pneg %p28
      $region22: #{fourier_forward.1} parent=19 // pred_check_branch
        %105 = sbr.rel (%p103) target = $region24
      $region23: #{fourier_forward.1} parent=19 // pred_region
        %s106 = smul.u32 16, %s8
        %p107 = scmp.lt.s32.totalorder %s106, 63
        %s108 = scalar_select %p107, %s106, 63
        %s109 = smul.addr %s108, 2
        %s110 = smul.addr %s109, 8
        %s111 = scalar_lea.vmem %s0, %s110
        %s112 = smul.u32 16, %s8
      $region24: #{fourier_forward.1} parent=19 // pred_fallthru
        _
    $region20: #{fourier_forward.1} parent=5 // pred_fallthru
      _
    %p113 = scmp.le.s32.totalorder 1, %s8
    %p114 = scmp.lt.s32.totalorder %s8, 5
    %p115 = pnand %p113, %p114
    %p116 = pneg %p115
    // Predicated region
    $region25: #{fourier_forward.1} parent=5 // pred_check
      _
    $region26: #{fourier_forward.1} parent=5 // pred_check_branch
      %118 = sbr.rel (%p115) target = $region28
    $region27: #{fourier_forward.1} parent=5 // pred_region
      %s119 = ssub.s32 %s8, 1
      %s120 = smul.u32 16, %s13
      %p121 = scmp.lt.s32.totalorder %s120, 63
      %s122 = scalar_select %p121, %s120, 63
      %s123 = smul.addr %s122, 2
      %s124 = smul.addr %s123, 8
      %s125 = scalar_lea.vmem %s0, %s124
      %p126 = pneg %p34
      %p127 = pneg %p31
      %p128 = pneg %p55
      %p129 = pneg %p52
      %p130 = pneg %p81
      %p131 = pneg %p78
      %s132 = smul.u32 16, %s13
      %p133 = scmp.lt.s32.totalorder %s132, 63
      %s134 = scalar_select %p133, %s132, 63
      %s135 = smul.addr %s134, 8
      %s136 = scalar_lea.vmem %s2, %s135
      %s137 = smul.u32 16, %s13
      %p138 = scmp.lt.s32.totalorder %s137, 63
      %s139 = scalar_select %p138, %s137, 63
      %s140 = smul.addr %s139, 2
      %s141 = smul.addr %s140, 8
      %s142 = scalar_lea.vmem %s0, %s141
      %s143 = smul.u32 16, %s13
      %s144 = smul.u32 16, %s13
      %p145 = scmp.lt.s32.totalorder %s144, 63
      %s146 = scalar_select %p145, %s144, 63
      %s147 = smul.addr %s146, 8
      %s148 = scalar_lea.vmem %s2, %s147
      %s149 = smul.u32 16, %s13
      %v150 = vld [vmem:[%s142] sm:$0xff]
      %v151 = vld [vmem:[%s142 + $0x8] sm:$0xff]
      %v152 = vld [vmem:[%s142 + $0x10] sm:$0xff]
      %v153 = vld [vmem:[%s142 + $0x18] sm:$0xff]
      %v154 = vld [vmem:[%s142 + $0x20] sm:$0xff]
      %v155 = vld [vmem:[%s142 + $0x28] sm:$0xff]
      %v156 = vld [vmem:[%s142 + $0x30] sm:$0xff]
      %v157 = vld [vmem:[%s142 + $0x38] sm:$0xff]
      %v158 = vld [vmem:[%s142 + $0x40] sm:$0xff]
      %v159 = vld [vmem:[%s142 + $0x48] sm:$0xff]
      %v160 = vld [vmem:[%s142 + $0x50] sm:$0xff]
      %v161 = vld [vmem:[%s142 + $0x58] sm:$0xff]
      %v162 = vld [vmem:[%s142 + $0x60] sm:$0xff]
      %v163 = vld [vmem:[%s142 + $0x68] sm:$0xff]
      %v164 = vld [vmem:[%s142 + $0x70] sm:$0xff]
      %v165 = vld [vmem:[%s142 + $0x78] sm:$0xff]
      %v166 = vld [vmem:[%s142 + $0x80] sm:$0xff]
      %v167 = vld [vmem:[%s142 + $0x88] sm:$0xff]
      %v168 = vld [vmem:[%s142 + $0x90] sm:$0xff]
      %v169 = vld [vmem:[%s142 + $0x98] sm:$0xff]
      %v170 = vld [vmem:[%s142 + $0xa0] sm:$0xff]
      %v171 = vld [vmem:[%s142 + $0xa8] sm:$0xff]
      %v172 = vld [vmem:[%s142 + $0xb0] sm:$0xff]
      %v173 = vld [vmem:[%s142 + $0xb8] sm:$0xff]
      %v174 = vld [vmem:[%s142 + $0xc0] sm:$0xff]
      %v175 = vld [vmem:[%s142 + $0xc8] sm:$0xff]
      %v176 = vld [vmem:[%s142 + $0xd0] sm:$0xff]
      %v177 = vld [vmem:[%s142 + $0xd8] sm:$0xff]
      %v178 = vld [vmem:[%s142 + $0xe0] sm:$0xff]
      %v179 = vld [vmem:[%s142 + $0xe8] sm:$0xff]
      %v180 = vld [vmem:[%s142 + $0xf0] sm:$0xff]
      %v181 = vld [vmem:[%s142 + $0xf8] sm:$0xff]
      %v182 = vld [vmem:[%s1] sm:$0xff]
      %v183 = vld [vmem:[%s1 + $0x8] sm:$0xff]
      %v184 = vld [vmem:[%s1 + $0x10] sm:$0xff]
      %v185 = vld [vmem:[%s1 + $0x18] sm:$0xff]
      %v186 = vld [vmem:[%s1 + $0x20] sm:$0xff]
      %v187 = vld [vmem:[%s1 + $0x28] sm:$0xff]
      %v188 = vld [vmem:[%s1 + $0x30] sm:$0xff]
      %v189 = vld [vmem:[%s1 + $0x38] sm:$0xff]
      %v190 = vld [vmem:[%s1 + $0x40] sm:$0xff]
      %v191 = vld [vmem:[%s1 + $0x48] sm:$0xff]
      %v192 = vld [vmem:[%s1 + $0x50] sm:$0xff]
      %v193 = vld [vmem:[%s1 + $0x58] sm:$0xff]
      %v194 = vld [vmem:[%s1 + $0x60] sm:$0xff]
      %v195 = vld [vmem:[%s1 + $0x68] sm:$0xff]
      %v196 = vld [vmem:[%s1 + $0x70] sm:$0xff]
      %v197 = vld [vmem:[%s1 + $0x78] sm:$0xff]
      %v198 = vld [vmem:[%s1 + $0x80] sm:$0xff]
      %v199 = vld [vmem:[%s1 + $0x88] sm:$0xff]
      %v200 = vld [vmem:[%s1 + $0x90] sm:$0xff]
      %v201 = vld [vmem:[%s1 + $0x98] sm:$0xff]
      %v202 = vld [vmem:[%s1 + $0xa0] sm:$0xff]
      %v203 = vld [vmem:[%s1 + $0xa8] sm:$0xff]
      %v204 = vld [vmem:[%s1 + $0xb0] sm:$0xff]
      %v205 = vld [vmem:[%s1 + $0xb8] sm:$0xff]
      %v206 = vld [vmem:[%s1 + $0xc0] sm:$0xff]
      %v207 = vld [vmem:[%s1 + $0xc8] sm:$0xff]
      %v208 = vld [vmem:[%s1 + $0xd0] sm:$0xff]
      %v209 = vld [vmem:[%s1 + $0xd8] sm:$0xff]
      %v210 = vld [vmem:[%s1 + $0xe0] sm:$0xff]
      %v211 = vld [vmem:[%s1 + $0xe8] sm:$0xff]
      %v212 = vld [vmem:[%s1 + $0xf0] sm:$0xff]
      %v213 = vld [vmem:[%s1 + $0xf8] sm:$0xff]
      %214 = vmatprep.subr.mxu0 0.0
      %v215 = vand.u32 %v182, 4294901760
      %216 = vmatpush1.msra.mxu0 %v215
      %217 = vmatprep.subr.mxu0 0.0
      %v218 = vand.u32 %v183, 4294901760
      %219 = vmatpush1.msra.mxu0 %v218
      %220 = vmatprep.subr.mxu0 0.0
      %v221 = vand.u32 %v184, 4294901760
      %222 = vmatpush1.msra.mxu0 %v221
      %223 = vmatprep.subr.mxu0 0.0
      %v224 = vand.u32 %v185, 4294901760
      %225 = vmatpush1.msra.mxu0 %v224
      %226 = vmatprep.subr.mxu0 0.0
      %v227 = vand.u32 %v186, 4294901760
      %228 = vmatpush1.msra.mxu0 %v227
      %229 = vmatprep.subr.mxu0 0.0
      %v230 = vand.u32 %v187, 4294901760
      %231 = vmatpush1.msra.mxu0 %v230
      %232 = vmatprep.subr.mxu0 0.0
      %v233 = vand.u32 %v188, 4294901760
      %234 = vmatpush1.msra.mxu0 %v233
      %235 = vmatprep.subr.mxu0 0.0
      %v236 = vand.u32 %v189, 4294901760
      %237 = vmatpush1.msra.mxu0 %v236
      %238 = vmatprep.subr.mxu0 0.0
      %v239 = vand.u32 %v190, 4294901760
      %240 = vmatpush1.msra.mxu0 %v239
      %241 = vmatprep.subr.mxu0 0.0
      %v242 = vand.u32 %v191, 4294901760
      %243 = vmatpush1.msra.mxu0 %v242
      %244 = vmatprep.subr.mxu0 0.0
      %v245 = vand.u32 %v192, 4294901760
      %246 = vmatpush1.msra.mxu0 %v245
      %247 = vmatprep.subr.mxu0 0.0
      %v248 = vand.u32 %v193, 4294901760
      %249 = vmatpush1.msra.mxu0 %v248
      %250 = vmatprep.subr.mxu0 0.0
      %v251 = vand.u32 %v194, 4294901760
      %252 = vmatpush1.msra.mxu0 %v251
      %253 = vmatprep.subr.mxu0 0.0
      %v254 = vand.u32 %v195, 4294901760
      %255 = vmatpush1.msra.mxu0 %v254
      %256 = vmatprep.subr.mxu0 0.0
      %v257 = vand.u32 %v196, 4294901760
      %258 = vmatpush1.msra.mxu0 %v257
      %259 = vmatprep.subr.mxu0 0.0
      %v260 = vand.u32 %v197, 4294901760
      %261 = vmatpush1.msra.mxu0 %v260
      %262 = vmatprep.subr.mxu0 0.0
      %v263 = vand.u32 %v198, 4294901760
      %264 = vmatpush1.msra.mxu0 %v263
      %265 = vmatprep.subr.mxu0 0.0
      %v266 = vand.u32 %v199, 4294901760
      %267 = vmatpush1.msra.mxu0 %v266
      %268 = vmatprep.subr.mxu0 0.0
      %v269 = vand.u32 %v200, 4294901760
      %270 = vmatpush1.msra.mxu0 %v269
      %271 = vmatprep.subr.mxu0 0.0
      %v272 = vand.u32 %v201, 4294901760
      %273 = vmatpush1.msra.mxu0 %v272
      %274 = vmatprep.subr.mxu0 0.0
      %v275 = vand.u32 %v202, 4294901760
      %276 = vmatpush1.msra.mxu0 %v275
      %277 = vmatprep.subr.mxu0 0.0
      %v278 = vand.u32 %v203, 4294901760
      %279 = vmatpush1.msra.mxu0 %v278
      %280 = vmatprep.subr.mxu0 0.0
      %v281 = vand.u32 %v204, 4294901760
      %282 = vmatpush1.msra.mxu0 %v281
      %283 = vmatprep.subr.mxu0 0.0
      %v284 = vand.u32 %v205, 4294901760
      %285 = vmatpush1.msra.mxu0 %v284
      %286 = vmatprep.subr.mxu0 0.0
      %v287 = vand.u32 %v206, 4294901760
      %288 = vmatpush1.msra.mxu0 %v287
      %289 = vmatprep.subr.mxu0 0.0
      %v290 = vand.u32 %v207, 4294901760
      %291 = vmatpush1.msra.mxu0 %v290
      %292 = vmatprep.subr.mxu0 0.0
      %v293 = vand.u32 %v208, 4294901760
      %294 = vmatpush1.msra.mxu0 %v293
      %295 = vmatprep.subr.mxu0 0.0
      %v296 = vand.u32 %v209, 4294901760
      %297 = vmatpush1.msra.mxu0 %v296
      %298 = vmatprep.subr.mxu0 0.0
      %v299 = vand.u32 %v210, 4294901760
      %300 = vmatpush1.msra.mxu0 %v299
      %301 = vmatprep.subr.mxu0 0.0
      %v302 = vand.u32 %v211, 4294901760
      %303 = vmatpush1.msra.mxu0 %v302
      %304 = vmatprep.subr.mxu0 0.0
      %v305 = vand.u32 %v212, 4294901760
      %306 = vmatpush1.msra.mxu0 %v305
      %307 = vmatprep.subr.mxu0 0.0
      %v308 = vand.u32 %v213, 4294901760
      %309 = vmatpush1.msra.mxu0 %v308
      %v310 = vand.u32 %v151, 4294901760
      %v311 = vsub.f32 %v151, %v310
      %v312 = vand.u32 %v311, 4294901760
      %v313 = vsub.f32 %v311, %v312
      %v314 = vand.u32 %v313, 4294901760
      %315 = vmatprep.mubr.f32.mxu0 %v314
      %v316 = vand.u32 %v150, 4294901760
      %v317 = vsub.f32 %v150, %v316
      %v318 = vand.u32 %v317, 4294901760
      %v319 = vsub.f32 %v317, %v318
      %v320 = vand.u32 %v319, 4294901760
      %321 = vmatmul.mubr.f32.gmra.mrb[0].mxu0 %v320
      %v322 = vpop.f32.mrb[0].mxu0
      %v323 = vadd.f32 0.0, %v322
      %v324 = vpop.f32.mrb[0].mxu0
      %v325 = vand.u32 %v153, 4294901760
      %v326 = vsub.f32 %v153, %v325
      %v327 = vand.u32 %v326, 4294901760
      %v328 = vsub.f32 %v326, %v327
      %v329 = vand.u32 %v328, 4294901760
      %330 = vmatprep.mubr.f32.mxu0 %v329
      %v331 = vand.u32 %v152, 4294901760
      %v332 = vsub.f32 %v152, %v331
      %v333 = vand.u32 %v332, 4294901760
      %v334 = vsub.f32 %v332, %v333
      %v335 = vand.u32 %v334, 4294901760
      %336 = vmatmul.mubr.f32.gmra.mrb[0].mxu0 %v335
      %v337 = vpop.f32.mrb[0].mxu0
      %v338 = vadd.f32 0.0, %v337
      %v339 = vpop.f32.mrb[0].mxu0
      %v340 = vand.u32 %v155, 4294901760
      %v341 = vsub.f32 %v155, %v340
      %v342 = vand.u32 %v341, 4294901760
      %v343 = vsub.f32 %v341, %v342
      %v344 = vand.u32 %v343, 4294901760
      %345 = vmatprep.mubr.f32.mxu0 %v344
      %v346 = vand.u32 %v154, 4294901760
      %v347 = vsub.f32 %v154, %v346
      %v348 = vand.u32 %v347, 4294901760
      %v349 = vsub.f32 %v347, %v348
      %v350 = vand.u32 %v349, 4294901760
      %351 = vmatmul.mubr.f32.gmra.mrb[0].mxu0 %v350
      %v352 = vpop.f32.mrb[0].mxu0
      %v353 = vadd.f32 0.0, %v352
      %v354 = vpop.f32.mrb[0].mxu0
      %v355 = vand.u32 %v157, 4294901760
      %v356 = vsub.f32 %v157, %v355
      %v357 = vand.u32 %v356, 4294901760
      %v358 = vsub.f32 %v356, %v357
      %v359 = vand.u32 %v358, 4294901760
      %360 = vmatprep.mubr.f32.mxu0 %v359
      %v361 = vand.u32 %v156, 4294901760
      %v362 = vsub.f32 %v156, %v361
      %v363 = vand.u32 %v362, 4294901760
      %v364 = vsub.f32 %v362, %v363
      %v365 = vand.u32 %v364, 4294901760
      %366 = vmatmul.mubr.f32.gmra.mrb[0].mxu0 %v365
      %v367 = vpop.f32.mrb[0].mxu0
      %v368 = vadd.f32 0.0, %v367
      %v369 = vpop.f32.mrb[0].mxu0
      %v370 = vand.u32 %v159, 4294901760
      %v371 = vsub.f32 %v159, %v370
      %v372 = vand.u32 %v371, 4294901760
      %v373 = vsub.f32 %v371, %v372
      %v374 = vand.u32 %v373, 4294901760
      %375 = vmatprep.mubr.f32.mxu0 %v374
      %v376 = vand.u32 %v158, 4294901760
      %v377 = vsub.f32 %v158, %v376
      %v378 = vand.u32 %v377, 4294901760
      %v379 = vsub.f32 %v377, %v378
      %v380 = vand.u32 %v379, 4294901760
      %381 = vmatmul.mubr.f32.gmra.mrb[0].mxu0 %v380
      %v382 = vpop.f32.mrb[0].mxu0
      %v383 = vadd.f32 0.0, %v382
      %v384 = vpop.f32.mrb[0].mxu0
      %v385 = vand.u32 %v161, 4294901760
      %v386 = vsub.f32 %v161, %v385
      %v387 = vand.u32 %v386, 4294901760
      %v388 = vsub.f32 %v386, %v387
      %v389 = vand.u32 %v388, 4294901760
      %390 = vmatprep.mubr.f32.mxu0 %v389
      %v391 = vand.u32 %v160, 4294901760
      %v392 = vsub.f32 %v160, %v391
      %v393 = vand.u32 %v392, 4294901760
      %v394 = vsub.f32 %v392, %v393
      %v395 = vand.u32 %v394, 4294901760
      %396 = vmatmul.mubr.f32.gmra.mrb[0].mxu0 %v395
      %v397 = vpop.f32.mrb[0].mxu0
      %v398 = vadd.f32 0.0, %v397
      %v399 = vpop.f32.mrb[0].mxu0
      %v400 = vand.u32 %v163, 4294901760
      %v401 = vsub.f32 %v163, %v400
      %v402 = vand.u32 %v401, 4294901760
      %v403 = vsub.f32 %v401, %v402
      %v404 = vand.u32 %v403, 4294901760
      %405 = vmatprep.mubr.f32.mxu0 %v404
      %v406 = vand.u32 %v162, 4294901760
      %v407 = vsub.f32 %v162, %v406
      %v408 = vand.u32 %v407, 4294901760
      %v409 = vsub.f32 %v407, %v408
      %v410 = vand.u32 %v409, 4294901760
      %411 = vmatmul.mubr.f32.gmra.mrb[0].mxu0 %v410
      %v412 = vpop.f32.mrb[0].mxu0
      %v413 = vadd.f32 0.0, %v412
      %v414 = vpop.f32.mrb[0].mxu0
      %v415 = vand.u32 %v165, 4294901760
      %v416 = vsub.f32 %v165, %v415
      %v417 = vand.u32 %v416, 4294901760
      %v418 = vsub.f32 %v416, %v417
      %v419 = vand.u32 %v418, 4294901760
      %420 = vmatprep.mubr.f32.mxu0 %v419
      %v421 = vand.u32 %v164, 4294901760
      %v422 = vsub.f32 %v164, %v421
      %v423 = vand.u32 %v422, 4294901760
      %v424 = vsub.f32 %v422, %v423
      %v425 = vand.u32 %v424, 4294901760
      %426 = vmatmul.mubr.f32.gmra.mrb[0].mxu0 %v425
      %v427 = vpop.f32.mrb[0].mxu0
      %v428 = vadd.f32 0.0, %v427
      %v429 = vpop.f32.mrb[0].mxu0
      %v430 = vand.u32 %v167, 4294901760
      %v431 = vsub.f32 %v167, %v430
      %v432 = vand.u32 %v431, 4294901760
      %v433 = vsub.f32 %v431, %v432
      %v434 = vand.u32 %v433, 4294901760
      %435 = vmatprep.mubr.f32.mxu0 %v434
      %v436 = vand.u32 %v166, 4294901760
      %v437 = vsub.f32 %v166, %v436
      %v438 = vand.u32 %v437, 4294901760
      %v439 = vsub.f32 %v437, %v438
      %v440 = vand.u32 %v439, 4294901760
      %441 = vmatmul.mubr.f32.gmra.mrb[0].mxu0 %v440
      %v442 = vpop.f32.mrb[0].mxu0
      %v443 = vadd.f32 0.0, %v442
      %v444 = vpop.f32.mrb[0].mxu0
      %v445 = vand.u32 %v169, 4294901760
      %v446 = vsub.f32 %v169, %v445
      %v447 = vand.u32 %v446, 4294901760
      %v448 = vsub.f32 %v446, %v447
      %v449 = vand.u32 %v448, 4294901760
      %450 = vmatprep.mubr.f32.mxu0 %v449
      %v451 = vand.u32 %v168, 4294901760
      %v452 = vsub.f32 %v168, %v451
      %v453 = vand.u32 %v452, 4294901760
      %v454 = vsub.f32 %v452, %v453
      %v455 = vand.u32 %v454, 4294901760
      %456 = vmatmul.mubr.f32.gmra.mrb[0].mxu0 %v455
      %v457 = vpop.f32.mrb[0].mxu0
      %v458 = vadd.f32 0.0, %v457
      %v459 = vpop.f32.mrb[0].mxu0
      %v460 = vand.u32 %v171, 4294901760
      %v461 = vsub.f32 %v171, %v460
      %v462 = vand.u32 %v461, 4294901760
      %v463 = vsub.f32 %v461, %v462
      %v464 = vand.u32 %v463, 4294901760
      %465 = vmatprep.mubr.f32.mxu0 %v464
      %v466 = vand.u32 %v170, 4294901760
      %v467 = vsub.f32 %v170, %v466
      %v468 = vand.u32 %v467, 4294901760
      %v469 = vsub.f32 %v467, %v468
      %v470 = vand.u32 %v469, 4294901760
      %471 = vmatmul.mubr.f32.gmra.mrb[0].mxu0 %v470
      %v472 = vpop.f32.mrb[0].mxu0
      %v473 = vadd.f32 0.0, %v472
      %v474 = vpop.f32.mrb[0].mxu0
      %v475 = vand.u32 %v173, 4294901760
      %v476 = vsub.f32 %v173, %v475
      %v477 = vand.u32 %v476, 4294901760
      %v478 = vsub.f32 %v476, %v477
      %v479 = vand.u32 %v478, 4294901760
      %480 = vmatprep.mubr.f32.mxu0 %v479
      %v481 = vand.u32 %v172, 4294901760
      %v482 = vsub.f32 %v172, %v481
      %v483 = vand.u32 %v482, 4294901760
      %v484 = vsub.f32 %v482, %v483
      %v485 = vand.u32 %v484, 4294901760
      %486 = vmatmul.mubr.f32.gmra.mrb[0].mxu0 %v485
      %v487 = vpop.f32.mrb[0].mxu0
      %v488 = vadd.f32 0.0, %v487
      %v489 = vpop.f32.mrb[0].mxu0
      %v490 = vand.u32 %v175, 4294901760
      %v491 = vsub.f32 %v175, %v490
      %v492 = vand.u32 %v491, 4294901760
      %v493 = vsub.f32 %v491, %v492
      %v494 = vand.u32 %v493, 4294901760
      %495 = vmatprep.mubr.f32.mxu0 %v494
      %v496 = vand.u32 %v174, 4294901760
      %v497 = vsub.f32 %v174, %v496
      %v498 = vand.u32 %v497, 4294901760
      %v499 = vsub.f32 %v497, %v498
      %v500 = vand.u32 %v499, 4294901760
      %501 = vmatmul.mubr.f32.gmra.mrb[0].mxu0 %v500
      %v502 = vpop.f32.mrb[0].mxu0
      %v503 = vadd.f32 0.0, %v502
      %v504 = vpop.f32.mrb[0].mxu0
      %v505 = vand.u32 %v177, 4294901760
      %v506 = vsub.f32 %v177, %v505
      %v507 = vand.u32 %v506, 4294901760
      %v508 = vsub.f32 %v506, %v507
      %v509 = vand.u32 %v508, 4294901760
      %510 = vmatprep.mubr.f32.mxu0 %v509
      %v511 = vand.u32 %v176, 4294901760
      %v512 = vsub.f32 %v176, %v511
      %v513 = vand.u32 %v512, 4294901760
      %v514 = vsub.f32 %v512, %v513
      %v515 = vand.u32 %v514, 4294901760
      %516 = vmatmul.mubr.f32.gmra.mrb[0].mxu0 %v515
      %v517 = vpop.f32.mrb[0].mxu0
      %v518 = vadd.f32 0.0, %v517
      %v519 = vpop.f32.mrb[0].mxu0
      %v520 = vand.u32 %v179, 4294901760
      %v521 = vsub.f32 %v179, %v520
      %v522 = vand.u32 %v521, 4294901760
      %v523 = vsub.f32 %v521, %v522
      %v524 = vand.u32 %v523, 4294901760
      %525 = vmatprep.mubr.f32.mxu0 %v524
      %v526 = vand.u32 %v178, 4294901760
      %v527 = vsub.f32 %v178, %v526
      %v528 = vand.u32 %v527, 4294901760
      %v529 = vsub.f32 %v527, %v528
      %v530 = vand.u32 %v529, 4294901760
      %531 = vmatmul.mubr.f32.gmra.mrb[0].mxu0 %v530
      %v532 = vpop.f32.mrb[0].mxu0
      %v533 = vadd.f32 0.0, %v532
      %v534 = vpop.f32.mrb[0].mxu0
      %v535 = vand.u32 %v181, 4294901760
      %v536 = vsub.f32 %v181, %v535
      %v537 = vand.u32 %v536, 4294901760
      %v538 = vsub.f32 %v536, %v537
      %v539 = vand.u32 %v538, 4294901760
      %540 = vmatprep.mubr.f32.mxu0 %v539
      %v541 = vand.u32 %v180, 4294901760
      %v542 = vsub.f32 %v180, %v541
      %v543 = vand.u32 %v542, 4294901760
      %v544 = vsub.f32 %v542, %v543
      %v545 = vand.u32 %v544, 4294901760
      %546 = vmatmul.mubr.f32.gmra.mrb[0].mxu0 %v545
      %v547 = vpop.f32.mrb[0].mxu0
      %v548 = vadd.f32 0.0, %v547
      %v549 = vpop.f32.mrb[0].mxu0
      %550 = vdwg.mxu0
      %551 = vmatprep.subr.mxu0 0.0
      %v552 = vand.u32 %v182, 4294901760
      %v553 = vsub.f32 %v182, %v552
      %v554 = vand.u32 %v553, 4294901760
      %v555 = vsub.f32 %v553, %v554
      %v556 = vand.u32 %v555, 4294901760
      %557 = vmatpush1.msra.mxu0 %v556
      %558 = vmatprep.subr.mxu0 0.0
      %v559 = vand.u32 %v183, 4294901760
      %v560 = vsub.f32 %v183, %v559
      %v561 = vand.u32 %v560, 4294901760
      %v562 = vsub.f32 %v560, %v561
      %v563 = vand.u32 %v562, 4294901760
      %564 = vmatpush1.msra.mxu0 %v563
      %565 = vmatprep.subr.mxu0 0.0
      %v566 = vand.u32 %v184, 4294901760
      %v567 = vsub.f32 %v184, %v566
      %v568 = vand.u32 %v567, 4294901760
      %v569 = vsub.f32 %v567, %v568
      %v570 = vand.u32 %v569, 4294901760
      %571 = vmatpush1.msra.mxu0 %v570
      %572 = vmatprep.subr.mxu0 0.0
      %v573 = vand.u32 %v185, 4294901760
      %v574 = vsub.f32 %v185, %v573
      %v575 = vand.u32 %v574, 4294901760
      %v576 = vsub.f32 %v574, %v575
      %v577 = vand.u32 %v576, 4294901760
      %578 = vmatpush1.msra.mxu0 %v577
      %579 = vmatprep.subr.mxu0 0.0
      %v580 = vand.u32 %v186, 4294901760
      %v581 = vsub.f32 %v186, %v580
      %v582 = vand.u32 %v581, 4294901760
      %v583 = vsub.f32 %v581, %v582
      %v584 = vand.u32 %v583, 4294901760
      %585 = vmatpush1.msra.mxu0 %v584
      %586 = vmatprep.subr.mxu0 0.0
      %v587 = vand.u32 %v187, 4294901760
      %v588 = vsub.f32 %v187, %v587
      %v589 = vand.u32 %v588, 4294901760
      %v590 = vsub.f32 %v588, %v589
      %v591 = vand.u32 %v590, 4294901760
      %592 = vmatpush1.msra.mxu0 %v591
      %593 = vmatprep.subr.mxu0 0.0
      %v594 = vand.u32 %v188, 4294901760
      %v595 = vsub.f32 %v188, %v594
      %v596 = vand.u32 %v595, 4294901760
      %v597 = vsub.f32 %v595, %v596
      %v598 = vand.u32 %v597, 4294901760
      %599 = vmatpush1.msra.mxu0 %v598
      %600 = vmatprep.subr.mxu0 0.0
      %v601 = vand.u32 %v189, 4294901760
      %v602 = vsub.f32 %v189, %v601
      %v603 = vand.u32 %v602, 4294901760
      %v604 = vsub.f32 %v602, %v603
      %v605 = vand.u32 %v604, 4294901760
      %606 = vmatpush1.msra.mxu0 %v605
      %607 = vmatprep.subr.mxu0 0.0
      %v608 = vand.u32 %v190, 4294901760
      %v609 = vsub.f32 %v190, %v608
      %v610 = vand.u32 %v609, 4294901760
      %v611 = vsub.f32 %v609, %v610
      %v612 = vand.u32 %v611, 4294901760
      %613 = vmatpush1.msra.mxu0 %v612
      %614 = vmatprep.subr.mxu0 0.0
      %v615 = vand.u32 %v191, 4294901760
      %v616 = vsub.f32 %v191, %v615
      %v617 = vand.u32 %v616, 4294901760
      %v618 = vsub.f32 %v616, %v617
      %v619 = vand.u32 %v618, 4294901760
      %620 = vmatpush1.msra.mxu0 %v619
      %621 = vmatprep.subr.mxu0 0.0
      %v622 = vand.u32 %v192, 4294901760
      %v623 = vsub.f32 %v192, %v622
      %v624 = vand.u32 %v623, 4294901760
      %v625 = vsub.f32 %v623, %v624
      %v626 = vand.u32 %v625, 4294901760
      %627 = vmatpush1.msra.mxu0 %v626
      %628 = vmatprep.subr.mxu0 0.0
      %v629 = vand.u32 %v193, 4294901760
      %v630 = vsub.f32 %v193, %v629
      %v631 = vand.u32 %v630, 4294901760
      %v632 = vsub.f32 %v630, %v631
      %v633 = vand.u32 %v632, 4294901760
      %634 = vmatpush1.msra.mxu0 %v633
      %635 = vmatprep.subr.mxu0 0.0
      %v636 = vand.u32 %v194, 4294901760
      %v637 = vsub.f32 %v194, %v636
      %v638 = vand.u32 %v637, 4294901760
      %v639 = vsub.f32 %v637, %v638
      %v640 = vand.u32 %v639, 4294901760
      %641 = vmatpush1.msra.mxu0 %v640
      %642 = vmatprep.subr.mxu0 0.0
      %v643 = vand.u32 %v195, 4294901760
      %v644 = vsub.f32 %v195, %v643
      %v645 = vand.u32 %v644, 4294901760
      %v646 = vsub.f32 %v644, %v645
      %v647 = vand.u32 %v646, 4294901760
      %648 = vmatpush1.msra.mxu0 %v647
      %649 = vmatprep.subr.mxu0 0.0
      %v650 = vand.u32 %v196, 4294901760
      %v651 = vsub.f32 %v196, %v650
      %v652 = vand.u32 %v651, 4294901760
      %v653 = vsub.f32 %v651, %v652
      %v654 = vand.u32 %v653, 4294901760
      %655 = vmatpush1.msra.mxu0 %v654
      %656 = vmatprep.subr.mxu0 0.0
      %v657 = vand.u32 %v197, 4294901760
      %v658 = vsub.f32 %v197, %v657
      %v659 = vand.u32 %v658, 4294901760
      %v660 = vsub.f32 %v658, %v659
      %v661 = vand.u32 %v660, 4294901760
      %662 = vmatpush1.msra.mxu0 %v661
      %663 = vmatprep.subr.mxu0 0.0
      %v664 = vand.u32 %v198, 4294901760
      %v665 = vsub.f32 %v198, %v664
      %v666 = vand.u32 %v665, 4294901760
      %v667 = vsub.f32 %v665, %v666
      %v668 = vand.u32 %v667, 4294901760
      %669 = vmatpush1.msra.mxu0 %v668
      %670 = vmatprep.subr.mxu0 0.0
      %v671 = vand.u32 %v199, 4294901760
      %v672 = vsub.f32 %v199, %v671
      %v673 = vand.u32 %v672, 4294901760
      %v674 = vsub.f32 %v672, %v673
      %v675 = vand.u32 %v674, 4294901760
      %676 = vmatpush1.msra.mxu0 %v675
      %677 = vmatprep.subr.mxu0 0.0
      %v678 = vand.u32 %v200, 4294901760
      %v679 = vsub.f32 %v200, %v678
      %v680 = vand.u32 %v679, 4294901760
      %v681 = vsub.f32 %v679, %v680
      %v682 = vand.u32 %v681, 4294901760
      %683 = vmatpush1.msra.mxu0 %v682
      %684 = vmatprep.subr.mxu0 0.0
      %v685 = vand.u32 %v201, 4294901760
      %v686 = vsub.f32 %v201, %v685
      %v687 = vand.u32 %v686, 4294901760
      %v688 = vsub.f32 %v686, %v687
      %v689 = vand.u32 %v688, 4294901760
      %690 = vmatpush1.msra.mxu0 %v689
      %691 = vmatprep.subr.mxu0 0.0
      %v692 = vand.u32 %v202, 4294901760
      %v693 = vsub.f32 %v202, %v692
      %v694 = vand.u32 %v693, 4294901760
      %v695 = vsub.f32 %v693, %v694
      %v696 = vand.u32 %v695, 4294901760
      %697 = vmatpush1.msra.mxu0 %v696
      %698 = vmatprep.subr.mxu0 0.0
      %v699 = vand.u32 %v203, 4294901760
      %v700 = vsub.f32 %v203, %v699
      %v701 = vand.u32 %v700, 4294901760
      %v702 = vsub.f32 %v700, %v701
      %v703 = vand.u32 %v702, 4294901760
      %704 = vmatpush1.msra.mxu0 %v703
      %705 = vmatprep.subr.mxu0 0.0
      %v706 = vand.u32 %v204, 4294901760
      %v707 = vsub.f32 %v204, %v706
      %v708 = vand.u32 %v707, 4294901760
      %v709 = vsub.f32 %v707, %v708
      %v710 = vand.u32 %v709, 4294901760
      %711 = vmatpush1.msra.mxu0 %v710
      %712 = vmatprep.subr.mxu0 0.0
      %v713 = vand.u32 %v205, 4294901760
      %v714 = vsub.f32 %v205, %v713
      %v715 = vand.u32 %v714, 4294901760
      %v716 = vsub.f32 %v714, %v715
      %v717 = vand.u32 %v716, 4294901760
      %718 = vmatpush1.msra.mxu0 %v717
      %719 = vmatprep.subr.mxu0 0.0
      %v720 = vand.u32 %v206, 4294901760
      %v721 = vsub.f32 %v206, %v720
      %v722 = vand.u32 %v721, 4294901760
      %v723 = vsub.f32 %v721, %v722
      %v724 = vand.u32 %v723, 4294901760
      %725 = vmatpush1.msra.mxu0 %v724
      %726 = vmatprep.subr.mxu0 0.0
      %v727 = vand.u32 %v207, 4294901760
      %v728 = vsub.f32 %v207, %v727
      %v729 = vand.u32 %v728, 4294901760
      %v730 = vsub.f32 %v728, %v729
      %v731 = vand.u32 %v730, 4294901760
      %732 = vmatpush1.msra.mxu0 %v731
      %733 = vmatprep.subr.mxu0 0.0
      %v734 = vand.u32 %v208, 4294901760
      %v735 = vsub.f32 %v208, %v734
      %v736 = vand.u32 %v735, 4294901760
      %v737 = vsub.f32 %v735, %v736
      %v738 = vand.u32 %v737, 4294901760
      %739 = vmatpush1.msra.mxu0 %v738
      %740 = vmatprep.subr.mxu0 0.0
      %v741 = vand.u32 %v209, 4294901760
      %v742 = vsub.f32 %v209, %v741
      %v743 = vand.u32 %v742, 4294901760
      %v744 = vsub.f32 %v742, %v743
      %v745 = vand.u32 %v744, 4294901760
      %746 = vmatpush1.msra.mxu0 %v745
      %747 = vmatprep.subr.mxu0 0.0
      %v748 = vand.u32 %v210, 4294901760
      %v749 = vsub.f32 %v210, %v748
      %v750 = vand.u32 %v749, 4294901760
      %v751 = vsub.f32 %v749, %v750
      %v752 = vand.u32 %v751, 4294901760
      %753 = vmatpush1.msra.mxu0 %v752
      %754 = vmatprep.subr.mxu0 0.0
      %v755 = vand.u32 %v211, 4294901760
      %v756 = vsub.f32 %v211, %v755
      %v757 = vand.u32 %v756, 4294901760
      %v758 = vsub.f32 %v756, %v757
      %v759 = vand.u32 %v758, 4294901760
      %760 = vmatpush1.msra.mxu0 %v759
      %761 = vmatprep.subr.mxu0 0.0
      %v762 = vand.u32 %v212, 4294901760
      %v763 = vsub.f32 %v212, %v762
      %v764 = vand.u32 %v763, 4294901760
      %v765 = vsub.f32 %v763, %v764
      %v766 = vand.u32 %v765, 4294901760
      %767 = vmatpush1.msra.mxu0 %v766
      %768 = vmatprep.subr.mxu0 0.0
      %v769 = vand.u32 %v213, 4294901760
      %v770 = vsub.f32 %v213, %v769
      %v771 = vand.u32 %v770, 4294901760
      %v772 = vsub.f32 %v770, %v771
      %v773 = vand.u32 %v772, 4294901760
      %774 = vmatpush1.msra.mxu0 %v773
      %v775 = vand.u32 %v151, 4294901760
      %776 = vmatprep.mubr.f32.mxu0 %v775
      %v777 = vand.u32 %v150, 4294901760
      %778 = vmatmul.mubr.f32.gmra.mrb[0].mxu0 %v777
      %v779 = vpop.f32.mrb[0].mxu0
      %v780 = vadd.f32 %v323, %v779
      %v781 = vpop.f32.mrb[0].mxu0
      %v782 = vand.u32 %v153, 4294901760
      %783 = vmatprep.mubr.f32.mxu0 %v782
      %v784 = vand.u32 %v152, 4294901760
      %785 = vmatmul.mubr.f32.gmra.mrb[0].mxu0 %v784
      %v786 = vpop.f32.mrb[0].mxu0
      %v787 = vadd.f32 %v338, %v786
      %v788 = vpop.f32.mrb[0].mxu0
      %v789 = vand.u32 %v155, 4294901760
      %790 = vmatprep.mubr.f32.mxu0 %v789
      %v791 = vand.u32 %v154, 4294901760
      %792 = vmatmul.mubr.f32.gmra.mrb[0].mxu0 %v791
      %v793 = vpop.f32.mrb[0].mxu0
      %v794 = vadd.f32 %v353, %v793
      %v795 = vpop.f32.mrb[0].mxu0
      %v796 = vand.u32 %v157, 4294901760
      %797 = vmatprep.mubr.f32.mxu0 %v796
      %v798 = vand.u32 %v156, 4294901760
      %799 = vmatmul.mubr.f32.gmra.mrb[0].mxu0 %v798
      %v800 = vpop.f32.mrb[0].mxu0
      %v801 = vadd.f32 %v368, %v800
      %v802 = vpop.f32.mrb[0].mxu0
      %v803 = vand.u32 %v159, 4294901760
      %804 = vmatprep.mubr.f32.mxu0 %v803
      %v805 = vand.u32 %v158, 4294901760
      %806 = vmatmul.mubr.f32.gmra.mrb[0].mxu0 %v805
      %v807 = vpop.f32.mrb[0].mxu0
      %v808 = vadd.f32 %v383, %v807
      %v809 = vpop.f32.mrb[0].mxu0
      %v810 = vand.u32 %v161, 4294901760
      %811 = vmatprep.mubr.f32.mxu0 %v810
      %v812 = vand.u32 %v160, 4294901760
      %813 = vmatmul.mubr.f32.gmra.mrb[0].mxu0 %v812
      %v814 = vpop.f32.mrb[0].mxu0
      %v815 = vadd.f32 %v398, %v814
      %v816 = vpop.f32.mrb[0].mxu0
      %v817 = vand.u32 %v163, 4294901760
      %818 = vmatprep.mubr.f32.mxu0 %v817
      %v819 = vand.u32 %v162, 4294901760
      %820 = vmatmul.mubr.f32.gmra.mrb[0].mxu0 %v819
      %v821 = vpop.f32.mrb[0].mxu0
      %v822 = vadd.f32 %v413, %v821
      %v823 = vpop.f32.mrb[0].mxu0
      %v824 = vand.u32 %v165, 4294901760
      %825 = vmatprep.mubr.f32.mxu0 %v824
      %v826 = vand.u32 %v164, 4294901760
      %827 = vmatmul.mubr.f32.gmra.mrb[0].mxu0 %v826
      %v828 = vpop.f32.mrb[0].mxu0
      %v829 = vadd.f32 %v428, %v828
      %v830 = vpop.f32.mrb[0].mxu0
      %v831 = vand.u32 %v167, 4294901760
      %832 = vmatprep.mubr.f32.mxu0 %v831
      %v833 = vand.u32 %v166, 4294901760
      %834 = vmatmul.mubr.f32.gmra.mrb[0].mxu0 %v833
      %v835 = vpop.f32.mrb[0].mxu0
      %v836 = vadd.f32 %v443, %v835
      %v837 = vpop.f32.mrb[0].mxu0
      %v838 = vand.u32 %v169, 4294901760
      %839 = vmatprep.mubr.f32.mxu0 %v838
      %v840 = vand.u32 %v168, 4294901760
      %841 = vmatmul.mubr.f32.gmra.mrb[0].mxu0 %v840
      %v842 = vpop.f32.mrb[0].mxu0
      %v843 = vadd.f32 %v458, %v842
      %v844 = vpop.f32.mrb[0].mxu0
      %v845 = vand.u32 %v171, 4294901760
      %846 = vmatprep.mubr.f32.mxu0 %v845
      %v847 = vand.u32 %v170, 4294901760
      %848 = vmatmul.mubr.f32.gmra.mrb[0].mxu0 %v847
      %v849 = vpop.f32.mrb[0].mxu0
      %v850 = vadd.f32 %v473, %v849
      %v851 = vpop.f32.mrb[0].mxu0
      %v852 = vand.u32 %v173, 4294901760
      %853 = vmatprep.mubr.f32.mxu0 %v852
      %v854 = vand.u32 %v172, 4294901760
      %855 = vmatmul.mubr.f32.gmra.mrb[0].mxu0 %v854
      %v856 = vpop.f32.mrb[0].mxu0
      %v857 = vadd.f32 %v488, %v856
      %v858 = vpop.f32.mrb[0].mxu0
      %v859 = vand.u32 %v175, 4294901760
      %860 = vmatprep.mubr.f32.mxu0 %v859
      %v861 = vand.u32 %v174, 4294901760
      %862 = vmatmul.mubr.f32.gmra.mrb[0].mxu0 %v861
      %v863 = vpop.f32.mrb[0].mxu0
      %v864 = vadd.f32 %v503, %v863
      %v865 = vpop.f32.mrb[0].mxu0
      %v866 = vand.u32 %v177, 4294901760
      %867 = vmatprep.mubr.f32.mxu0 %v866
      %v868 = vand.u32 %v176, 4294901760
      %869 = vmatmul.mubr.f32.gmra.mrb[0].mxu0 %v868
      %v870 = vpop.f32.mrb[0].mxu0
      %v871 = vadd.f32 %v518, %v870
      %v872 = vpop.f32.mrb[0].mxu0
      %v873 = vand.u32 %v179, 4294901760
      %874 = vmatprep.mubr.f32.mxu0 %v873
      %v875 = vand.u32 %v178, 4294901760
      %876 = vmatmul.mubr.f32.gmra.mrb[0].mxu0 %v875
      %v877 = vpop.f32.mrb[0].mxu0
      %v878 = vadd.f32 %v533, %v877
      %v879 = vpop.f32.mrb[0].mxu0
      %v880 = vand.u32 %v181, 4294901760
      %881 = vmatprep.mubr.f32.mxu0 %v880
      %v882 = vand.u32 %v180, 4294901760
      %883 = vmatmul.mubr.f32.gmra.mrb[0].mxu0 %v882
      %v884 = vpop.f32.mrb[0].mxu0
      %v885 = vadd.f32 %v548, %v884
      %v886 = vpop.f32.mrb[0].mxu0
      %887 = vdwg.mxu0
      %888 = vmatprep.subr.mxu0 0.0
      %v889 = vand.u32 %v182, 4294901760
      %v890 = vsub.f32 %v182, %v889
      %891 = vmatpush1.msra.mxu0 %v890
      %892 = vmatprep.subr.mxu0 0.0
      %v893 = vand.u32 %v183, 4294901760
      %v894 = vsub.f32 %v183, %v893
      %895 = vmatpush1.msra.mxu0 %v894
      %896 = vmatprep.subr.mxu0 0.0
      %v897 = vand.u32 %v184, 4294901760
      %v898 = vsub.f32 %v184, %v897
      %899 = vmatpush1.msra.mxu0 %v898
      %900 = vmatprep.subr.mxu0 0.0
      %v901 = vand.u32 %v185, 4294901760
      %v902 = vsub.f32 %v185, %v901
      %903 = vmatpush1.msra.mxu0 %v902
      %904 = vmatprep.subr.mxu0 0.0
      %v905 = vand.u32 %v186, 4294901760
      %v906 = vsub.f32 %v186, %v905
      %907 = vmatpush1.msra.mxu0 %v906
      %908 = vmatprep.subr.mxu0 0.0
      %v909 = vand.u32 %v187, 4294901760
      %v910 = vsub.f32 %v187, %v909
      %911 = vmatpush1.msra.mxu0 %v910
      %912 = vmatprep.subr.mxu0 0.0
      %v913 = vand.u32 %v188, 4294901760
      %v914 = vsub.f32 %v188, %v913
      %915 = vmatpush1.msra.mxu0 %v914
      %916 = vmatprep.subr.mxu0 0.0
      %v917 = vand.u32 %v189, 4294901760
      %v918 = vsub.f32 %v189, %v917
      %919 = vmatpush1.msra.mxu0 %v918
      %920 = vmatprep.subr.mxu0 0.0
      %v921 = vand.u32 %v190, 4294901760
      %v922 = vsub.f32 %v190, %v921
      %923 = vmatpush1.msra.mxu0 %v922
      %924 = vmatprep.subr.mxu0 0.0
      %v925 = vand.u32 %v191, 4294901760
      %v926 = vsub.f32 %v191, %v925
      %927 = vmatpush1.msra.mxu0 %v926
      %928 = vmatprep.subr.mxu0 0.0
      %v929 = vand.u32 %v192, 4294901760
      %v930 = vsub.f32 %v192, %v929
      %931 = vmatpush1.msra.mxu0 %v930
      %932 = vmatprep.subr.mxu0 0.0
      %v933 = vand.u32 %v193, 4294901760
      %v934 = vsub.f32 %v193, %v933
      %935 = vmatpush1.msra.mxu0 %v934
      %936 = vmatprep.subr.mxu0 0.0
      %v937 = vand.u32 %v194, 4294901760
      %v938 = vsub.f32 %v194, %v937
      %939 = vmatpush1.msra.mxu0 %v938
      %940 = vmatprep.subr.mxu0 0.0
      %v941 = vand.u32 %v195, 4294901760
      %v942 = vsub.f32 %v195, %v941
      %943 = vmatpush1.msra.mxu0 %v942
      %944 = vmatprep.subr.mxu0 0.0
      %v945 = vand.u32 %v196, 4294901760
      %v946 = vsub.f32 %v196, %v945
      %947 = vmatpush1.msra.mxu0 %v946
      %948 = vmatprep.subr.mxu0 0.0
      %v949 = vand.u32 %v197, 4294901760
      %v950 = vsub.f32 %v197, %v949
      %951 = vmatpush1.msra.mxu0 %v950
      %952 = vmatprep.subr.mxu0 0.0
      %v953 = vand.u32 %v198, 4294901760
      %v954 = vsub.f32 %v198, %v953
      %955 = vmatpush1.msra.mxu0 %v954
      %956 = vmatprep.subr.mxu0 0.0
      %v957 = vand.u32 %v199, 4294901760
      %v958 = vsub.f32 %v199, %v957
      %959 = vmatpush1.msra.mxu0 %v958
      %960 = vmatprep.subr.mxu0 0.0
      %v961 = vand.u32 %v200, 4294901760
      %v962 = vsub.f32 %v200, %v961
      %963 = vmatpush1.msra.mxu0 %v962
      %964 = vmatprep.subr.mxu0 0.0
      %v965 = vand.u32 %v201, 4294901760
      %v966 = vsub.f32 %v201, %v965
      %967 = vmatpush1.msra.mxu0 %v966
      %968 = vmatprep.subr.mxu0 0.0
      %v969 = vand.u32 %v202, 4294901760
      %v970 = vsub.f32 %v202, %v969
      %971 = vmatpush1.msra.mxu0 %v970
      %972 = vmatprep.subr.mxu0 0.0
      %v973 = vand.u32 %v203, 4294901760
      %v974 = vsub.f32 %v203, %v973
      %975 = vmatpush1.msra.mxu0 %v974
      %976 = vmatprep.subr.mxu0 0.0
      %v977 = vand.u32 %v204, 4294901760
      %v978 = vsub.f32 %v204, %v977
      %979 = vmatpush1.msra.mxu0 %v978
      %980 = vmatprep.subr.mxu0 0.0
      %v981 = vand.u32 %v205, 4294901760
      %v982 = vsub.f32 %v205, %v981
      %983 = vmatpush1.msra.mxu0 %v982
      %984 = vmatprep.subr.mxu0 0.0
      %v985 = vand.u32 %v206, 4294901760
      %v986 = vsub.f32 %v206, %v985
      %987 = vmatpush1.msra.mxu0 %v986
      %988 = vmatprep.subr.mxu0 0.0
      %v989 = vand.u32 %v207, 4294901760
      %v990 = vsub.f32 %v207, %v989
      %991 = vmatpush1.msra.mxu0 %v990
      %992 = vmatprep.subr.mxu0 0.0
      %v993 = vand.u32 %v208, 4294901760
      %v994 = vsub.f32 %v208, %v993
      %995 = vmatpush1.msra.mxu0 %v994
      %996 = vmatprep.subr.mxu0 0.0
      %v997 = vand.u32 %v209, 4294901760
      %v998 = vsub.f32 %v209, %v997
      %999 = vmatpush1.msra.mxu0 %v998
      %1000 = vmatprep.subr.mxu0 0.0
      %v1001 = vand.u32 %v210, 4294901760
      %v1002 = vsub.f32 %v210, %v1001
      %1003 = vmatpush1.msra.mxu0 %v1002
      %1004 = vmatprep.subr.mxu0 0.0
      %v1005 = vand.u32 %v211, 4294901760
      %v1006 = vsub.f32 %v211, %v1005
      %1007 = vmatpush1.msra.mxu0 %v1006
      %1008 = vmatprep.subr.mxu0 0.0
      %v1009 = vand.u32 %v212, 4294901760
      %v1010 = vsub.f32 %v212, %v1009
      %1011 = vmatpush1.msra.mxu0 %v1010
      %1012 = vmatprep.subr.mxu0 0.0
      %v1013 = vand.u32 %v213, 4294901760
      %v1014 = vsub.f32 %v213, %v1013
      %1015 = vmatpush1.msra.mxu0 %v1014
      %v1016 = vand.u32 %v151, 4294901760
      %v1017 = vsub.f32 %v151, %v1016
      %1018 = vmatprep.mubr.f32.mxu0 %v1017
      %v1019 = vand.u32 %v150, 4294901760
      %v1020 = vsub.f32 %v150, %v1019
      %1021 = vmatmul.mubr.f32.gmra.mrb[0].mxu0 %v1020
      %v1022 = vpop.f32.mrb[0].mxu0
      %v1023 = vadd.f32 %v780, %v1022
      %v1024 = vpop.f32.mrb[0].mxu0
      %v1025 = vand.u32 %v153, 4294901760
      %v1026 = vsub.f32 %v153, %v1025
      %1027 = vmatprep.mubr.f32.mxu0 %v1026
      %v1028 = vand.u32 %v152, 4294901760
      %v1029 = vsub.f32 %v152, %v1028
      %1030 = vmatmul.mubr.f32.gmra.mrb[0].mxu0 %v1029
      %v1031 = vpop.f32.mrb[0].mxu0
      %v1032 = vadd.f32 %v787, %v1031
      %v1033 = vpop.f32.mrb[0].mxu0
      %v1034 = vand.u32 %v155, 4294901760
      %v1035 = vsub.f32 %v155, %v1034
      %1036 = vmatprep.mubr.f32.mxu0 %v1035
      %v1037 = vand.u32 %v154, 4294901760
      %v1038 = vsub.f32 %v154, %v1037
      %1039 = vmatmul.mubr.f32.gmra.mrb[0].mxu0 %v1038
      %v1040 = vpop.f32.mrb[0].mxu0
      %v1041 = vadd.f32 %v794, %v1040
      %v1042 = vpop.f32.mrb[0].mxu0
      %v1043 = vand.u32 %v157, 4294901760
      %v1044 = vsub.f32 %v157, %v1043
      %1045 = vmatprep.mubr.f32.mxu0 %v1044
      %v1046 = vand.u32 %v156, 4294901760
      %v1047 = vsub.f32 %v156, %v1046
      %1048 = vmatmul.mubr.f32.gmra.mrb[0].mxu0 %v1047
      %v1049 = vpop.f32.mrb[0].mxu0
      %v1050 = vadd.f32 %v801, %v1049
      %v1051 = vpop.f32.mrb[0].mxu0
      %v1052 = vand.u32 %v159, 4294901760
      %v1053 = vsub.f32 %v159, %v1052
      %1054 = vmatprep.mubr.f32.mxu0 %v1053
      %v1055 = vand.u32 %v158, 4294901760
      %v1056 = vsub.f32 %v158, %v1055
      %1057 = vmatmul.mubr.f32.gmra.mrb[0].mxu0 %v1056
      %v1058 = vpop.f32.mrb[0].mxu0
      %v1059 = vadd.f32 %v808, %v1058
      %v1060 = vpop.f32.mrb[0].mxu0
      %v1061 = vand.u32 %v161, 4294901760
      %v1062 = vsub.f32 %v161, %v1061
      %1063 = vmatprep.mubr.f32.mxu0 %v1062
      %v1064 = vand.u32 %v160, 4294901760
      %v1065 = vsub.f32 %v160, %v1064
      %1066 = vmatmul.mubr.f32.gmra.mrb[0].mxu0 %v1065
      %v1067 = vpop.f32.mrb[0].mxu0
      %v1068 = vadd.f32 %v815, %v1067
      %v1069 = vpop.f32.mrb[0].mxu0
      %v1070 = vand.u32 %v163, 4294901760
      %v1071 = vsub.f32 %v163, %v1070
      %1072 = vmatprep.mubr.f32.mxu0 %v1071
      %v1073 = vand.u32 %v162, 4294901760
      %v1074 = vsub.f32 %v162, %v1073
      %1075 = vmatmul.mubr.f32.gmra.mrb[0].mxu0 %v1074
      %v1076 = vpop.f32.mrb[0].mxu0
      %v1077 = vadd.f32 %v822, %v1076
      %v1078 = vpop.f32.mrb[0].mxu0
      %v1079 = vand.u32 %v165, 4294901760
      %v1080 = vsub.f32 %v165, %v1079
      %1081 = vmatprep.mubr.f32.mxu0 %v1080
      %v1082 = vand.u32 %v164, 4294901760
      %v1083 = vsub.f32 %v164, %v1082
      %1084 = vmatmul.mubr.f32.gmra.mrb[0].mxu0 %v1083
      %v1085 = vpop.f32.mrb[0].mxu0
      %v1086 = vadd.f32 %v829, %v1085
      %v1087 = vpop.f32.mrb[0].mxu0
      %v1088 = vand.u32 %v167, 4294901760
      %v1089 = vsub.f32 %v167, %v1088
      %1090 = vmatprep.mubr.f32.mxu0 %v1089
      %v1091 = vand.u32 %v166, 4294901760
      %v1092 = vsub.f32 %v166, %v1091
      %1093 = vmatmul.mubr.f32.gmra.mrb[0].mxu0 %v1092
      %v1094 = vpop.f32.mrb[0].mxu0
      %v1095 = vadd.f32 %v836, %v1094
      %v1096 = vpop.f32.mrb[0].mxu0
      %v1097 = vand.u32 %v169, 4294901760
      %v1098 = vsub.f32 %v169, %v1097
      %1099 = vmatprep.mubr.f32.mxu0 %v1098
      %v1100 = vand.u32 %v168, 4294901760
      %v1101 = vsub.f32 %v168, %v1100
      %1102 = vmatmul.mubr.f32.gmra.mrb[0].mxu0 %v1101
      %v1103 = vpop.f32.mrb[0].mxu0
      %v1104 = vadd.f32 %v843, %v1103
      %v1105 = vpop.f32.mrb[0].mxu0
      %v1106 = vand.u32 %v171, 4294901760
      %v1107 = vsub.f32 %v171, %v1106
      %1108 = vmatprep.mubr.f32.mxu0 %v1107
      %v1109 = vand.u32 %v170, 4294901760
      %v1110 = vsub.f32 %v170, %v1109
      %1111 = vmatmul.mubr.f32.gmra.mrb[0].mxu0 %v1110
      %v1112 = vpop.f32.mrb[0].mxu0
      %v1113 = vadd.f32 %v850, %v1112
      %v1114 = vpop.f32.mrb[0].mxu0
      %v1115 = vand.u32 %v173, 4294901760
      %v1116 = vsub.f32 %v173, %v1115
      %1117 = vmatprep.mubr.f32.mxu0 %v1116
      %v1118 = vand.u32 %v172, 4294901760
      %v1119 = vsub.f32 %v172, %v1118
      %1120 = vmatmul.mubr.f32.gmra.mrb[0].mxu0 %v1119
      %v1121 = vpop.f32.mrb[0].mxu0
      %v1122 = vadd.f32 %v857, %v1121
      %v1123 = vpop.f32.mrb[0].mxu0
      %v1124 = vand.u32 %v175, 4294901760
      %v1125 = vsub.f32 %v175, %v1124
      %1126 = vmatprep.mubr.f32.mxu0 %v1125
      %v1127 = vand.u32 %v174, 4294901760
      %v1128 = vsub.f32 %v174, %v1127
      %1129 = vmatmul.mubr.f32.gmra.mrb[0].mxu0 %v1128
      %v1130 = vpop.f32.mrb[0].mxu0
      %v1131 = vadd.f32 %v864, %v1130
      %v1132 = vpop.f32.mrb[0].mxu0
      %v1133 = vand.u32 %v177, 4294901760
      %v1134 = vsub.f32 %v177, %v1133
      %1135 = vmatprep.mubr.f32.mxu0 %v1134
      %v1136 = vand.u32 %v176, 4294901760
      %v1137 = vsub.f32 %v176, %v1136
      %1138 = vmatmul.mubr.f32.gmra.mrb[0].mxu0 %v1137
      %v1139 = vpop.f32.mrb[0].mxu0
      %v1140 = vadd.f32 %v871, %v1139
      %v1141 = vpop.f32.mrb[0].mxu0
      %v1142 = vand.u32 %v179, 4294901760
      %v1143 = vsub.f32 %v179, %v1142
      %1144 = vmatprep.mubr.f32.mxu0 %v1143
      %v1145 = vand.u32 %v178, 4294901760
      %v1146 = vsub.f32 %v178, %v1145
      %1147 = vmatmul.mubr.f32.gmra.mrb[0].mxu0 %v1146
      %v1148 = vpop.f32.mrb[0].mxu0
      %v1149 = vadd.f32 %v878, %v1148
      %v1150 = vpop.f32.mrb[0].mxu0
      %v1151 = vand.u32 %v181, 4294901760
      %v1152 = vsub.f32 %v181, %v1151
      %1153 = vmatprep.mubr.f32.mxu0 %v1152
      %v1154 = vand.u32 %v180, 4294901760
      %v1155 = vsub.f32 %v180, %v1154
      %1156 = vmatmul.mubr.f32.gmra.mrb[0].mxu0 %v1155
      %v1157 = vpop.f32.mrb[0].mxu0
      %v1158 = vadd.f32 %v885, %v1157
      %v1159 = vpop.f32.mrb[0].mxu0
      %1160 = vdwg.mxu0
      %1161 = vmatprep.subr.mxu0 0.0
      %v1162 = vand.u32 %v182, 4294901760
      %1163 = vmatpush1.msra.mxu0 %v1162
      %1164 = vmatprep.subr.mxu0 0.0
      %v1165 = vand.u32 %v183, 4294901760
      %1166 = vmatpush1.msra.mxu0 %v1165
      %1167 = vmatprep.subr.mxu0 0.0
      %v1168 = vand.u32 %v184, 4294901760
      %1169 = vmatpush1.msra.mxu0 %v1168
      %1170 = vmatprep.subr.mxu0 0.0
      %v1171 = vand.u32 %v185, 4294901760
      %1172 = vmatpush1.msra.mxu0 %v1171
      %1173 = vmatprep.subr.mxu0 0.0
      %v1174 = vand.u32 %v186, 4294901760
      %1175 = vmatpush1.msra.mxu0 %v1174
      %1176 = vmatprep.subr.mxu0 0.0
      %v1177 = vand.u32 %v187, 4294901760
      %1178 = vmatpush1.msra.mxu0 %v1177
      %1179 = vmatprep.subr.mxu0 0.0
      %v1180 = vand.u32 %v188, 4294901760
      %1181 = vmatpush1.msra.mxu0 %v1180
      %1182 = vmatprep.subr.mxu0 0.0
      %v1183 = vand.u32 %v189, 4294901760
      %1184 = vmatpush1.msra.mxu0 %v1183
      %1185 = vmatprep.subr.mxu0 0.0
      %v1186 = vand.u32 %v190, 4294901760
      %1187 = vmatpush1.msra.mxu0 %v1186
      %1188 = vmatprep.subr.mxu0 0.0
      %v1189 = vand.u32 %v191, 4294901760
      %1190 = vmatpush1.msra.mxu0 %v1189
      %1191 = vmatprep.subr.mxu0 0.0
      %v1192 = vand.u32 %v192, 4294901760
      %1193 = vmatpush1.msra.mxu0 %v1192
      %1194 = vmatprep.subr.mxu0 0.0
      %v1195 = vand.u32 %v193, 4294901760
      %1196 = vmatpush1.msra.mxu0 %v1195
      %1197 = vmatprep.subr.mxu0 0.0
      %v1198 = vand.u32 %v194, 4294901760
      %1199 = vmatpush1.msra.mxu0 %v1198
      %1200 = vmatprep.subr.mxu0 0.0
      %v1201 = vand.u32 %v195, 4294901760
      %1202 = vmatpush1.msra.mxu0 %v1201
      %1203 = vmatprep.subr.mxu0 0.0
      %v1204 = vand.u32 %v196, 4294901760
      %1205 = vmatpush1.msra.mxu0 %v1204
      %1206 = vmatprep.subr.mxu0 0.0
      %v1207 = vand.u32 %v197, 4294901760
      %1208 = vmatpush1.msra.mxu0 %v1207
      %1209 = vmatprep.subr.mxu0 0.0
      %v1210 = vand.u32 %v198, 4294901760
      %1211 = vmatpush1.msra.mxu0 %v1210
      %1212 = vmatprep.subr.mxu0 0.0
      %v1213 = vand.u32 %v199, 4294901760
      %1214 = vmatpush1.msra.mxu0 %v1213
      %1215 = vmatprep.subr.mxu0 0.0
      %v1216 = vand.u32 %v200, 4294901760
      %1217 = vmatpush1.msra.mxu0 %v1216
      %1218 = vmatprep.subr.mxu0 0.0
      %v1219 = vand.u32 %v201, 4294901760
      %1220 = vmatpush1.msra.mxu0 %v1219
      %1221 = vmatprep.subr.mxu0 0.0
      %v1222 = vand.u32 %v202, 4294901760
      %1223 = vmatpush1.msra.mxu0 %v1222
      %1224 = vmatprep.subr.mxu0 0.0
      %v1225 = vand.u32 %v203, 4294901760
      %1226 = vmatpush1.msra.mxu0 %v1225
      %1227 = vmatprep.subr.mxu0 0.0
      %v1228 = vand.u32 %v204, 4294901760
      %1229 = vmatpush1.msra.mxu0 %v1228
      %1230 = vmatprep.subr.mxu0 0.0
      %v1231 = vand.u32 %v205, 4294901760
      %1232 = vmatpush1.msra.mxu0 %v1231
      %1233 = vmatprep.subr.mxu0 0.0
      %v1234 = vand.u32 %v206, 4294901760
      %1235 = vmatpush1.msra.mxu0 %v1234
      %1236 = vmatprep.subr.mxu0 0.0
      %v1237 = vand.u32 %v207, 4294901760
      %1238 = vmatpush1.msra.mxu0 %v1237
      %1239 = vmatprep.subr.mxu0 0.0
      %v1240 = vand.u32 %v208, 4294901760
      %1241 = vmatpush1.msra.mxu0 %v1240
      %1242 = vmatprep.subr.mxu0 0.0
      %v1243 = vand.u32 %v209, 4294901760
      %1244 = vmatpush1.msra.mxu0 %v1243
      %1245 = vmatprep.subr.mxu0 0.0
      %v1246 = vand.u32 %v210, 4294901760
      %1247 = vmatpush1.msra.mxu0 %v1246
      %1248 = vmatprep.subr.mxu0 0.0
      %v1249 = vand.u32 %v211, 4294901760
      %1250 = vmatpush1.msra.mxu0 %v1249
      %1251 = vmatprep.subr.mxu0 0.0
      %v1252 = vand.u32 %v212, 4294901760
      %1253 = vmatpush1.msra.mxu0 %v1252
      %1254 = vmatprep.subr.mxu0 0.0
      %v1255 = vand.u32 %v213, 4294901760
      %1256 = vmatpush1.msra.mxu0 %v1255
      %v1257 = vand.u32 %v151, 4294901760
      %v1258 = vsub.f32 %v151, %v1257
      %v1259 = vand.u32 %v1258, 4294901760
      %1260 = vmatprep.mubr.f32.mxu0 %v1259
      %v1261 = vand.u32 %v150, 4294901760
      %v1262 = vsub.f32 %v150, %v1261
      %v1263 = vand.u32 %v1262, 4294901760
      %1264 = vmatmul.mubr.f32.gmra.mrb[0].mxu0 %v1263
      %v1265 = vpop.f32.mrb[0].mxu0
      %v1266 = vadd.f32 %v1023, %v1265
      %v1267 = vpop.f32.mrb[0].mxu0
      %v1268 = vand.u32 %v153, 4294901760
      %v1269 = vsub.f32 %v153, %v1268
      %v1270 = vand.u32 %v1269, 4294901760
      %1271 = vmatprep.mubr.f32.mxu0 %v1270
      %v1272 = vand.u32 %v152, 4294901760
      %v1273 = vsub.f32 %v152, %v1272
      %v1274 = vand.u32 %v1273, 4294901760
      %1275 = vmatmul.mubr.f32.gmra.mrb[0].mxu0 %v1274
      %v1276 = vpop.f32.mrb[0].mxu0
      %v1277 = vadd.f32 %v1032, %v1276
      %v1278 = vpop.f32.mrb[0].mxu0
      %v1279 = vand.u32 %v155, 4294901760
      %v1280 = vsub.f32 %v155, %v1279
      %v1281 = vand.u32 %v1280, 4294901760
      %1282 = vmatprep.mubr.f32.mxu0 %v1281
      %v1283 = vand.u32 %v154, 4294901760
      %v1284 = vsub.f32 %v154, %v1283
      %v1285 = vand.u32 %v1284, 4294901760
      %1286 = vmatmul.mubr.f32.gmra.mrb[0].mxu0 %v1285
      %v1287 = vpop.f32.mrb[0].mxu0
      %v1288 = vadd.f32 %v1041, %v1287
      %v1289 = vpop.f32.mrb[0].mxu0
      %v1290 = vand.u32 %v157, 4294901760
      %v1291 = vsub.f32 %v157, %v1290
      %v1292 = vand.u32 %v1291, 4294901760
      %1293 = vmatprep.mubr.f32.mxu0 %v1292
      %v1294 = vand.u32 %v156, 4294901760
      %v1295 = vsub.f32 %v156, %v1294
      %v1296 = vand.u32 %v1295, 4294901760
      %1297 = vmatmul.mubr.f32.gmra.mrb[0].mxu0 %v1296
      %v1298 = vpop.f32.mrb[0].mxu0
      %v1299 = vadd.f32 %v1050, %v1298
      %v1300 = vpop.f32.mrb[0].mxu0
      %v1301 = vand.u32 %v159, 4294901760
      %v1302 = vsub.f32 %v159, %v1301
      %v1303 = vand.u32 %v1302, 4294901760
      %1304 = vmatprep.mubr.f32.mxu0 %v1303
      %v1305 = vand.u32 %v158, 4294901760
      %v1306 = vsub.f32 %v158, %v1305
      %v1307 = vand.u32 %v1306, 4294901760
      %1308 = vmatmul.mubr.f32.gmra.mrb[0].mxu0 %v1307
      %v1309 = vpop.f32.mrb[0].mxu0
      %v1310 = vadd.f32 %v1059, %v1309
      %v1311 = vpop.f32.mrb[0].mxu0
      %v1312 = vand.u32 %v161, 4294901760
      %v1313 = vsub.f32 %v161, %v1312
      %v1314 = vand.u32 %v1313, 4294901760
      %1315 = vmatprep.mubr.f32.mxu0 %v1314
      %v1316 = vand.u32 %v160, 4294901760
      %v1317 = vsub.f32 %v160, %v1316
      %v1318 = vand.u32 %v1317, 4294901760
      %1319 = vmatmul.mubr.f32.gmra.mrb[0].mxu0 %v1318
      %v1320 = vpop.f32.mrb[0].mxu0
      %v1321 = vadd.f32 %v1068, %v1320
      %v1322 = vpop.f32.mrb[0].mxu0
      %v1323 = vand.u32 %v163, 4294901760
      %v1324 = vsub.f32 %v163, %v1323
      %v1325 = vand.u32 %v1324, 4294901760
      %1326 = vmatprep.mubr.f32.mxu0 %v1325
      %v1327 = vand.u32 %v162, 4294901760
      %v1328 = vsub.f32 %v162, %v1327
      %v1329 = vand.u32 %v1328, 4294901760
      %1330 = vmatmul.mubr.f32.gmra.mrb[0].mxu0 %v1329
      %v1331 = vpop.f32.mrb[0].mxu0
      %v1332 = vadd.f32 %v1077, %v1331
      %v1333 = vpop.f32.mrb[0].mxu0
      %v1334 = vand.u32 %v165, 4294901760
      %v1335 = vsub.f32 %v165, %v1334
      %v1336 = vand.u32 %v1335, 4294901760
      %1337 = vmatprep.mubr.f32.mxu0 %v1336
      %v1338 = vand.u32 %v164, 4294901760
      %v1339 = vsub.f32 %v164, %v1338
      %v1340 = vand.u32 %v1339, 4294901760
      %1341 = vmatmul.mubr.f32.gmra.mrb[0].mxu0 %v1340
      %v1342 = vpop.f32.mrb[0].mxu0
      %v1343 = vadd.f32 %v1086, %v1342
      %v1344 = vpop.f32.mrb[0].mxu0
      %v1345 = vand.u32 %v167, 4294901760
      %v1346 = vsub.f32 %v167, %v1345
      %v1347 = vand.u32 %v1346, 4294901760
      %1348 = vmatprep.mubr.f32.mxu0 %v1347
      %v1349 = vand.u32 %v166, 4294901760
      %v1350 = vsub.f32 %v166, %v1349
      %v1351 = vand.u32 %v1350, 4294901760
      %1352 = vmatmul.mubr.f32.gmra.mrb[0].mxu0 %v1351
      %v1353 = vpop.f32.mrb[0].mxu0
      %v1354 = vadd.f32 %v1095, %v1353
      %v1355 = vpop.f32.mrb[0].mxu0
      %v1356 = vand.u32 %v169, 4294901760
      %v1357 = vsub.f32 %v169, %v1356
      %v1358 = vand.u32 %v1357, 4294901760
      %1359 = vmatprep.mubr.f32.mxu0 %v1358
      %v1360 = vand.u32 %v168, 4294901760
      %v1361 = vsub.f32 %v168, %v1360
      %v1362 = vand.u32 %v1361, 4294901760
      %1363 = vmatmul.mubr.f32.gmra.mrb[0].mxu0 %v1362
      %v1364 = vpop.f32.mrb[0].mxu0
      %v1365 = vadd.f32 %v1104, %v1364
      %v1366 = vpop.f32.mrb[0].mxu0
      %v1367 = vand.u32 %v171, 4294901760
      %v1368 = vsub.f32 %v171, %v1367
      %v1369 = vand.u32 %v1368, 4294901760
      %1370 = vmatprep.mubr.f32.mxu0 %v1369
      %v1371 = vand.u32 %v170, 4294901760
      %v1372 = vsub.f32 %v170, %v1371
      %v1373 = vand.u32 %v1372, 4294901760
      %1374 = vmatmul.mubr.f32.gmra.mrb[0].mxu0 %v1373
      %v1375 = vpop.f32.mrb[0].mxu0
      %v1376 = vadd.f32 %v1113, %v1375
      %v1377 = vpop.f32.mrb[0].mxu0
      %v1378 = vand.u32 %v173, 4294901760
      %v1379 = vsub.f32 %v173, %v1378
      %v1380 = vand.u32 %v1379, 4294901760
      %1381 = vmatprep.mubr.f32.mxu0 %v1380
      %v1382 = vand.u32 %v172, 4294901760
      %v1383 = vsub.f32 %v172, %v1382
      %v1384 = vand.u32 %v1383, 4294901760
      %1385 = vmatmul.mubr.f32.gmra.mrb[0].mxu0 %v1384
      %v1386 = vpop.f32.mrb[0].mxu0
      %v1387 = vadd.f32 %v1122, %v1386
      %v1388 = vpop.f32.mrb[0].mxu0
      %v1389 = vand.u32 %v175, 4294901760
      %v1390 = vsub.f32 %v175, %v1389
      %v1391 = vand.u32 %v1390, 4294901760
      %1392 = vmatprep.mubr.f32.mxu0 %v1391
      %v1393 = vand.u32 %v174, 4294901760
      %v1394 = vsub.f32 %v174, %v1393
      %v1395 = vand.u32 %v1394, 4294901760
      %1396 = vmatmul.mubr.f32.gmra.mrb[0].mxu0 %v1395
      %v1397 = vpop.f32.mrb[0].mxu0
      %v1398 = vadd.f32 %v1131, %v1397
      %v1399 = vpop.f32.mrb[0].mxu0
      %v1400 = vand.u32 %v177, 4294901760
      %v1401 = vsub.f32 %v177, %v1400
      %v1402 = vand.u32 %v1401, 4294901760
      %1403 = vmatprep.mubr.f32.mxu0 %v1402
      %v1404 = vand.u32 %v176, 4294901760
      %v1405 = vsub.f32 %v176, %v1404
      %v1406 = vand.u32 %v1405, 4294901760
      %1407 = vmatmul.mubr.f32.gmra.mrb[0].mxu0 %v1406
      %v1408 = vpop.f32.mrb[0].mxu0
      %v1409 = vadd.f32 %v1140, %v1408
      %v1410 = vpop.f32.mrb[0].mxu0
      %v1411 = vand.u32 %v179, 4294901760
      %v1412 = vsub.f32 %v179, %v1411
      %v1413 = vand.u32 %v1412, 4294901760
      %1414 = vmatprep.mubr.f32.mxu0 %v1413
      %v1415 = vand.u32 %v178, 4294901760
      %v1416 = vsub.f32 %v178, %v1415
      %v1417 = vand.u32 %v1416, 4294901760
      %1418 = vmatmul.mubr.f32.gmra.mrb[0].mxu0 %v1417
      %v1419 = vpop.f32.mrb[0].mxu0
      %v1420 = vadd.f32 %v1149, %v1419
      %v1421 = vpop.f32.mrb[0].mxu0
      %v1422 = vand.u32 %v181, 4294901760
      %v1423 = vsub.f32 %v181, %v1422
      %v1424 = vand.u32 %v1423, 4294901760
      %1425 = vmatprep.mubr.f32.mxu0 %v1424
      %v1426 = vand.u32 %v180, 4294901760
      %v1427 = vsub.f32 %v180, %v1426
      %v1428 = vand.u32 %v1427, 4294901760
      %1429 = vmatmul.mubr.f32.gmra.mrb[0].mxu0 %v1428
      %v1430 = vpop.f32.mrb[0].mxu0
      %v1431 = vadd.f32 %v1158, %v1430
      %v1432 = vpop.f32.mrb[0].mxu0
      %1433 = vdwg.mxu0
      %1434 = vmatprep.subr.mxu0 0.0
      %v1435 = vand.u32 %v182, 4294901760
      %v1436 = vsub.f32 %v182, %v1435
      %v1437 = vand.u32 %v1436, 4294901760
      %1438 = vmatpush1.msra.mxu0 %v1437
      %1439 = vmatprep.subr.mxu0 0.0
      %v1440 = vand.u32 %v183, 4294901760
      %v1441 = vsub.f32 %v183, %v1440
      %v1442 = vand.u32 %v1441, 4294901760
      %1443 = vmatpush1.msra.mxu0 %v1442
      %1444 = vmatprep.subr.mxu0 0.0
      %v1445 = vand.u32 %v184, 4294901760
      %v1446 = vsub.f32 %v184, %v1445
      %v1447 = vand.u32 %v1446, 4294901760
      %1448 = vmatpush1.msra.mxu0 %v1447
      %1449 = vmatprep.subr.mxu0 0.0
      %v1450 = vand.u32 %v185, 4294901760
      %v1451 = vsub.f32 %v185, %v1450
      %v1452 = vand.u32 %v1451, 4294901760
      %1453 = vmatpush1.msra.mxu0 %v1452
      %1454 = vmatprep.subr.mxu0 0.0
      %v1455 = vand.u32 %v186, 4294901760
      %v1456 = vsub.f32 %v186, %v1455
      %v1457 = vand.u32 %v1456, 4294901760
      %1458 = vmatpush1.msra.mxu0 %v1457
      %1459 = vmatprep.subr.mxu0 0.0
      %v1460 = vand.u32 %v187, 4294901760
      %v1461 = vsub.f32 %v187, %v1460
      %v1462 = vand.u32 %v1461, 4294901760
      %1463 = vmatpush1.msra.mxu0 %v1462
      %1464 = vmatprep.subr.mxu0 0.0
      %v1465 = vand.u32 %v188, 4294901760
      %v1466 = vsub.f32 %v188, %v1465
      %v1467 = vand.u32 %v1466, 4294901760
      %1468 = vmatpush1.msra.mxu0 %v1467
      %1469 = vmatprep.subr.mxu0 0.0
      %v1470 = vand.u32 %v189, 4294901760
      %v1471 = vsub.f32 %v189, %v1470
      %v1472 = vand.u32 %v1471, 4294901760
      %1473 = vmatpush1.msra.mxu0 %v1472
      %1474 = vmatprep.subr.mxu0 0.0
      %v1475 = vand.u32 %v190, 4294901760
      %v1476 = vsub.f32 %v190, %v1475
      %v1477 = vand.u32 %v1476, 4294901760
      %1478 = vmatpush1.msra.mxu0 %v1477
      %1479 = vmatprep.subr.mxu0 0.0
      %v1480 = vand.u32 %v191, 4294901760
      %v1481 = vsub.f32 %v191, %v1480
      %v1482 = vand.u32 %v1481, 4294901760
      %1483 = vmatpush1.msra.mxu0 %v1482
      %1484 = vmatprep.subr.mxu0 0.0
      %v1485 = vand.u32 %v192, 4294901760
      %v1486 = vsub.f32 %v192, %v1485
      %v1487 = vand.u32 %v1486, 4294901760
      %1488 = vmatpush1.msra.mxu0 %v1487
      %1489 = vmatprep.subr.mxu0 0.0
      %v1490 = vand.u32 %v193, 4294901760
      %v1491 = vsub.f32 %v193, %v1490
      %v1492 = vand.u32 %v1491, 4294901760
      %1493 = vmatpush1.msra.mxu0 %v1492
      %1494 = vmatprep.subr.mxu0 0.0
      %v1495 = vand.u32 %v194, 4294901760
      %v1496 = vsub.f32 %v194, %v1495
      %v1497 = vand.u32 %v1496, 4294901760
      %1498 = vmatpush1.msra.mxu0 %v1497
      %1499 = vmatprep.subr.mxu0 0.0
      %v1500 = vand.u32 %v195, 4294901760
      %v1501 = vsub.f32 %v195, %v1500
      %v1502 = vand.u32 %v1501, 4294901760
      %1503 = vmatpush1.msra.mxu0 %v1502
      %1504 = vmatprep.subr.mxu0 0.0
      %v1505 = vand.u32 %v196, 4294901760
      %v1506 = vsub.f32 %v196, %v1505
      %v1507 = vand.u32 %v1506, 4294901760
      %1508 = vmatpush1.msra.mxu0 %v1507
      %1509 = vmatprep.subr.mxu0 0.0
      %v1510 = vand.u32 %v197, 4294901760
      %v1511 = vsub.f32 %v197, %v1510
      %v1512 = vand.u32 %v1511, 4294901760
      %1513 = vmatpush1.msra.mxu0 %v1512
      %1514 = vmatprep.subr.mxu0 0.0
      %v1515 = vand.u32 %v198, 4294901760
      %v1516 = vsub.f32 %v198, %v1515
      %v1517 = vand.u32 %v1516, 4294901760
      %1518 = vmatpush1.msra.mxu0 %v1517
      %1519 = vmatprep.subr.mxu0 0.0
      %v1520 = vand.u32 %v199, 4294901760
      %v1521 = vsub.f32 %v199, %v1520
      %v1522 = vand.u32 %v1521, 4294901760
      %1523 = vmatpush1.msra.mxu0 %v1522
      %1524 = vmatprep.subr.mxu0 0.0
      %v1525 = vand.u32 %v200, 4294901760
      %v1526 = vsub.f32 %v200, %v1525
      %v1527 = vand.u32 %v1526, 4294901760
      %1528 = vmatpush1.msra.mxu0 %v1527
      %1529 = vmatprep.subr.mxu0 0.0
      %v1530 = vand.u32 %v201, 4294901760
      %v1531 = vsub.f32 %v201, %v1530
      %v1532 = vand.u32 %v1531, 4294901760
      %1533 = vmatpush1.msra.mxu0 %v1532
      %1534 = vmatprep.subr.mxu0 0.0
      %v1535 = vand.u32 %v202, 4294901760
      %v1536 = vsub.f32 %v202, %v1535
      %v1537 = vand.u32 %v1536, 4294901760
      %1538 = vmatpush1.msra.mxu0 %v1537
      %1539 = vmatprep.subr.mxu0 0.0
      %v1540 = vand.u32 %v203, 4294901760
      %v1541 = vsub.f32 %v203, %v1540
      %v1542 = vand.u32 %v1541, 4294901760
      %1543 = vmatpush1.msra.mxu0 %v1542
      %1544 = vmatprep.subr.mxu0 0.0
      %v1545 = vand.u32 %v204, 4294901760
      %v1546 = vsub.f32 %v204, %v1545
      %v1547 = vand.u32 %v1546, 4294901760
      %1548 = vmatpush1.msra.mxu0 %v1547
      %1549 = vmatprep.subr.mxu0 0.0
      %v1550 = vand.u32 %v205, 4294901760
      %v1551 = vsub.f32 %v205, %v1550
      %v1552 = vand.u32 %v1551, 4294901760
      %1553 = vmatpush1.msra.mxu0 %v1552
      %1554 = vmatprep.subr.mxu0 0.0
      %v1555 = vand.u32 %v206, 4294901760
      %v1556 = vsub.f32 %v206, %v1555
      %v1557 = vand.u32 %v1556, 4294901760
      %1558 = vmatpush1.msra.mxu0 %v1557
      %1559 = vmatprep.subr.mxu0 0.0
      %v1560 = vand.u32 %v207, 4294901760
      %v1561 = vsub.f32 %v207, %v1560
      %v1562 = vand.u32 %v1561, 4294901760
      %1563 = vmatpush1.msra.mxu0 %v1562
      %1564 = vmatprep.subr.mxu0 0.0
      %v1565 = vand.u32 %v208, 4294901760
      %v1566 = vsub.f32 %v208, %v1565
      %v1567 = vand.u32 %v1566, 4294901760
      %1568 = vmatpush1.msra.mxu0 %v1567
      %1569 = vmatprep.subr.mxu0 0.0
      %v1570 = vand.u32 %v209, 4294901760
      %v1571 = vsub.f32 %v209, %v1570
      %v1572 = vand.u32 %v1571, 4294901760
      %1573 = vmatpush1.msra.mxu0 %v1572
      %1574 = vmatprep.subr.mxu0 0.0
      %v1575 = vand.u32 %v210, 4294901760
      %v1576 = vsub.f32 %v210, %v1575
      %v1577 = vand.u32 %v1576, 4294901760
      %1578 = vmatpush1.msra.mxu0 %v1577
      %1579 = vmatprep.subr.mxu0 0.0
      %v1580 = vand.u32 %v211, 4294901760
      %v1581 = vsub.f32 %v211, %v1580
      %v1582 = vand.u32 %v1581, 4294901760
      %1583 = vmatpush1.msra.mxu0 %v1582
      %1584 = vmatprep.subr.mxu0 0.0
      %v1585 = vand.u32 %v212, 4294901760
      %v1586 = vsub.f32 %v212, %v1585
      %v1587 = vand.u32 %v1586, 4294901760
      %1588 = vmatpush1.msra.mxu0 %v1587
      %1589 = vmatprep.subr.mxu0 0.0
      %v1590 = vand.u32 %v213, 4294901760
      %v1591 = vsub.f32 %v213, %v1590
      %v1592 = vand.u32 %v1591, 4294901760
      %1593 = vmatpush1.msra.mxu0 %v1592
      %v1594 = vand.u32 %v151, 4294901760
      %1595 = vmatprep.mubr.f32.mxu0 %v1594
      %v1596 = vand.u32 %v150, 4294901760
      %1597 = vmatmul.mubr.f32.gmra.mrb[0].mxu0 %v1596
      %v1598 = vpop.f32.mrb[0].mxu0
      %v1599 = vadd.f32 %v1266, %v1598
      %v1600 = vpop.f32.mrb[0].mxu0
      %v1601 = vand.u32 %v153, 4294901760
      %1602 = vmatprep.mubr.f32.mxu0 %v1601
      %v1603 = vand.u32 %v152, 4294901760
      %1604 = vmatmul.mubr.f32.gmra.mrb[0].mxu0 %v1603
      %v1605 = vpop.f32.mrb[0].mxu0
      %v1606 = vadd.f32 %v1277, %v1605
      %v1607 = vpop.f32.mrb[0].mxu0
      %v1608 = vand.u32 %v155, 4294901760
      %1609 = vmatprep.mubr.f32.mxu0 %v1608
      %v1610 = vand.u32 %v154, 4294901760
      %1611 = vmatmul.mubr.f32.gmra.mrb[0].mxu0 %v1610
      %v1612 = vpop.f32.mrb[0].mxu0
      %v1613 = vadd.f32 %v1288, %v1612
      %v1614 = vpop.f32.mrb[0].mxu0
      %v1615 = vand.u32 %v157, 4294901760
      %1616 = vmatprep.mubr.f32.mxu0 %v1615
      %v1617 = vand.u32 %v156, 4294901760
      %1618 = vmatmul.mubr.f32.gmra.mrb[0].mxu0 %v1617
      %v1619 = vpop.f32.mrb[0].mxu0
      %v1620 = vadd.f32 %v1299, %v1619
      %v1621 = vpop.f32.mrb[0].mxu0
      %v1622 = vand.u32 %v159, 4294901760
      %1623 = vmatprep.mubr.f32.mxu0 %v1622
      %v1624 = vand.u32 %v158, 4294901760
      %1625 = vmatmul.mubr.f32.gmra.mrb[0].mxu0 %v1624
      %v1626 = vpop.f32.mrb[0].mxu0
      %v1627 = vadd.f32 %v1310, %v1626
      %v1628 = vpop.f32.mrb[0].mxu0
      %v1629 = vand.u32 %v161, 4294901760
      %1630 = vmatprep.mubr.f32.mxu0 %v1629
      %v1631 = vand.u32 %v160, 4294901760
      %1632 = vmatmul.mubr.f32.gmra.mrb[0].mxu0 %v1631
      %v1633 = vpop.f32.mrb[0].mxu0
      %v1634 = vadd.f32 %v1321, %v1633
      %v1635 = vpop.f32.mrb[0].mxu0
      %v1636 = vand.u32 %v163, 4294901760
      %1637 = vmatprep.mubr.f32.mxu0 %v1636
      %v1638 = vand.u32 %v162, 4294901760
      %1639 = vmatmul.mubr.f32.gmra.mrb[0].mxu0 %v1638
      %v1640 = vpop.f32.mrb[0].mxu0
      %v1641 = vadd.f32 %v1332, %v1640
      %v1642 = vpop.f32.mrb[0].mxu0
      %v1643 = vand.u32 %v165, 4294901760
      %1644 = vmatprep.mubr.f32.mxu0 %v1643
      %v1645 = vand.u32 %v164, 4294901760
      %1646 = vmatmul.mubr.f32.gmra.mrb[0].mxu0 %v1645
      %v1647 = vpop.f32.mrb[0].mxu0
      %v1648 = vadd.f32 %v1343, %v1647
      %v1649 = vpop.f32.mrb[0].mxu0
      %v1650 = vand.u32 %v167, 4294901760
      %1651 = vmatprep.mubr.f32.mxu0 %v1650
      %v1652 = vand.u32 %v166, 4294901760
      %1653 = vmatmul.mubr.f32.gmra.mrb[0].mxu0 %v1652
      %v1654 = vpop.f32.mrb[0].mxu0
      %v1655 = vadd.f32 %v1354, %v1654
      %v1656 = vpop.f32.mrb[0].mxu0
      %v1657 = vand.u32 %v169, 4294901760
      %1658 = vmatprep.mubr.f32.mxu0 %v1657
      %v1659 = vand.u32 %v168, 4294901760
      %1660 = vmatmul.mubr.f32.gmra.mrb[0].mxu0 %v1659
      %v1661 = vpop.f32.mrb[0].mxu0
      %v1662 = vadd.f32 %v1365, %v1661
      %v1663 = vpop.f32.mrb[0].mxu0
      %v1664 = vand.u32 %v171, 4294901760
      %1665 = vmatprep.mubr.f32.mxu0 %v1664
      %v1666 = vand.u32 %v170, 4294901760
      %1667 = vmatmul.mubr.f32.gmra.mrb[0].mxu0 %v1666
      %v1668 = vpop.f32.mrb[0].mxu0
      %v1669 = vadd.f32 %v1376, %v1668
      %v1670 = vpop.f32.mrb[0].mxu0
      %v1671 = vand.u32 %v173, 4294901760
      %1672 = vmatprep.mubr.f32.mxu0 %v1671
      %v1673 = vand.u32 %v172, 4294901760
      %1674 = vmatmul.mubr.f32.gmra.mrb[0].mxu0 %v1673
      %v1675 = vpop.f32.mrb[0].mxu0
      %v1676 = vadd.f32 %v1387, %v1675
      %v1677 = vpop.f32.mrb[0].mxu0
      %v1678 = vand.u32 %v175, 4294901760
      %1679 = vmatprep.mubr.f32.mxu0 %v1678
      %v1680 = vand.u32 %v174, 4294901760
      %1681 = vmatmul.mubr.f32.gmra.mrb[0].mxu0 %v1680
      %v1682 = vpop.f32.mrb[0].mxu0
      %v1683 = vadd.f32 %v1398, %v1682
      %v1684 = vpop.f32.mrb[0].mxu0
      %v1685 = vand.u32 %v177, 4294901760
      %1686 = vmatprep.mubr.f32.mxu0 %v1685
      %v1687 = vand.u32 %v176, 4294901760
      %1688 = vmatmul.mubr.f32.gmra.mrb[0].mxu0 %v1687
      %v1689 = vpop.f32.mrb[0].mxu0
      %v1690 = vadd.f32 %v1409, %v1689
      %v1691 = vpop.f32.mrb[0].mxu0
      %v1692 = vand.u32 %v179, 4294901760
      %1693 = vmatprep.mubr.f32.mxu0 %v1692
      %v1694 = vand.u32 %v178, 4294901760
      %1695 = vmatmul.mubr.f32.gmra.mrb[0].mxu0 %v1694
      %v1696 = vpop.f32.mrb[0].mxu0
      %v1697 = vadd.f32 %v1420, %v1696
      %v1698 = vpop.f32.mrb[0].mxu0
      %v1699 = vand.u32 %v181, 4294901760
      %1700 = vmatprep.mubr.f32.mxu0 %v1699
      %v1701 = vand.u32 %v180, 4294901760
      %1702 = vmatmul.mubr.f32.gmra.mrb[0].mxu0 %v1701
      %v1703 = vpop.f32.mrb[0].mxu0
      %v1704 = vadd.f32 %v1431, %v1703
      %v1705 = vpop.f32.mrb[0].mxu0
      %1706 = vdwg.mxu0
      %1707 = vmatprep.subr.mxu0 0.0
      %v1708 = vand.u32 %v182, 4294901760
      %1709 = vmatpush1.msra.mxu0 %v1708
      %1710 = vmatprep.subr.mxu0 0.0
      %v1711 = vand.u32 %v183, 4294901760
      %1712 = vmatpush1.msra.mxu0 %v1711
      %1713 = vmatprep.subr.mxu0 0.0
      %v1714 = vand.u32 %v184, 4294901760
      %1715 = vmatpush1.msra.mxu0 %v1714
      %1716 = vmatprep.subr.mxu0 0.0
      %v1717 = vand.u32 %v185, 4294901760
      %1718 = vmatpush1.msra.mxu0 %v1717
      %1719 = vmatprep.subr.mxu0 0.0
      %v1720 = vand.u32 %v186, 4294901760
      %1721 = vmatpush1.msra.mxu0 %v1720
      %1722 = vmatprep.subr.mxu0 0.0
      %v1723 = vand.u32 %v187, 4294901760
      %1724 = vmatpush1.msra.mxu0 %v1723
      %1725 = vmatprep.subr.mxu0 0.0
      %v1726 = vand.u32 %v188, 4294901760
      %1727 = vmatpush1.msra.mxu0 %v1726
      %1728 = vmatprep.subr.mxu0 0.0
      %v1729 = vand.u32 %v189, 4294901760
      %1730 = vmatpush1.msra.mxu0 %v1729
      %1731 = vmatprep.subr.mxu0 0.0
      %v1732 = vand.u32 %v190, 4294901760
      %1733 = vmatpush1.msra.mxu0 %v1732
      %1734 = vmatprep.subr.mxu0 0.0
      %v1735 = vand.u32 %v191, 4294901760
      %1736 = vmatpush1.msra.mxu0 %v1735
      %1737 = vmatprep.subr.mxu0 0.0
      %v1738 = vand.u32 %v192, 4294901760
      %1739 = vmatpush1.msra.mxu0 %v1738
      %1740 = vmatprep.subr.mxu0 0.0
      %v1741 = vand.u32 %v193, 4294901760
      %1742 = vmatpush1.msra.mxu0 %v1741
      %1743 = vmatprep.subr.mxu0 0.0
      %v1744 = vand.u32 %v194, 4294901760
      %1745 = vmatpush1.msra.mxu0 %v1744
      %1746 = vmatprep.subr.mxu0 0.0
      %v1747 = vand.u32 %v195, 4294901760
      %1748 = vmatpush1.msra.mxu0 %v1747
      %1749 = vmatprep.subr.mxu0 0.0
      %v1750 = vand.u32 %v196, 4294901760
      %1751 = vmatpush1.msra.mxu0 %v1750
      %1752 = vmatprep.subr.mxu0 0.0
      %v1753 = vand.u32 %v197, 4294901760
      %1754 = vmatpush1.msra.mxu0 %v1753
      %1755 = vmatprep.subr.mxu0 0.0
      %v1756 = vand.u32 %v198, 4294901760
      %1757 = vmatpush1.msra.mxu0 %v1756
      %1758 = vmatprep.subr.mxu0 0.0
      %v1759 = vand.u32 %v199, 4294901760
      %1760 = vmatpush1.msra.mxu0 %v1759
      %1761 = vmatprep.subr.mxu0 0.0
      %v1762 = vand.u32 %v200, 4294901760
      %1763 = vmatpush1.msra.mxu0 %v1762
      %1764 = vmatprep.subr.mxu0 0.0
      %v1765 = vand.u32 %v201, 4294901760
      %1766 = vmatpush1.msra.mxu0 %v1765
      %1767 = vmatprep.subr.mxu0 0.0
      %v1768 = vand.u32 %v202, 4294901760
      %1769 = vmatpush1.msra.mxu0 %v1768
      %1770 = vmatprep.subr.mxu0 0.0
      %v1771 = vand.u32 %v203, 4294901760
      %1772 = vmatpush1.msra.mxu0 %v1771
      %1773 = vmatprep.subr.mxu0 0.0
      %v1774 = vand.u32 %v204, 4294901760
      %1775 = vmatpush1.msra.mxu0 %v1774
      %1776 = vmatprep.subr.mxu0 0.0
      %v1777 = vand.u32 %v205, 4294901760
      %1778 = vmatpush1.msra.mxu0 %v1777
      %1779 = vmatprep.subr.mxu0 0.0
      %v1780 = vand.u32 %v206, 4294901760
      %1781 = vmatpush1.msra.mxu0 %v1780
      %1782 = vmatprep.subr.mxu0 0.0
      %v1783 = vand.u32 %v207, 4294901760
      %1784 = vmatpush1.msra.mxu0 %v1783
      %1785 = vmatprep.subr.mxu0 0.0
      %v1786 = vand.u32 %v208, 4294901760
      %1787 = vmatpush1.msra.mxu0 %v1786
      %1788 = vmatprep.subr.mxu0 0.0
      %v1789 = vand.u32 %v209, 4294901760
      %1790 = vmatpush1.msra.mxu0 %v1789
      %1791 = vmatprep.subr.mxu0 0.0
      %v1792 = vand.u32 %v210, 4294901760
      %1793 = vmatpush1.msra.mxu0 %v1792
      %1794 = vmatprep.subr.mxu0 0.0
      %v1795 = vand.u32 %v211, 4294901760
      %1796 = vmatpush1.msra.mxu0 %v1795
      %1797 = vmatprep.subr.mxu0 0.0
      %v1798 = vand.u32 %v212, 4294901760
      %1799 = vmatpush1.msra.mxu0 %v1798
      %1800 = vmatprep.subr.mxu0 0.0
      %v1801 = vand.u32 %v213, 4294901760
      %1802 = vmatpush1.msra.mxu0 %v1801
      %v1803 = vand.u32 %v151, 4294901760
      %1804 = vmatprep.mubr.f32.mxu0 %v1803
      %v1805 = vand.u32 %v150, 4294901760
      %1806 = vmatmul.mubr.f32.gmra.mrb[0].mxu0 %v1805
      %v1807 = vpop.f32.mrb[0].mxu0
      %v1808 = vadd.f32 %v1599, %v1807
      %v1809 = vpop.f32.mrb[0].mxu0
      %v1810 = vand.u32 %v153, 4294901760
      %1811 = vmatprep.mubr.f32.mxu0 %v1810
      %v1812 = vand.u32 %v152, 4294901760
      %1813 = vmatmul.mubr.f32.gmra.mrb[0].mxu0 %v1812
      %v1814 = vpop.f32.mrb[0].mxu0
      %v1815 = vadd.f32 %v1606, %v1814
      %v1816 = vpop.f32.mrb[0].mxu0
      %v1817 = vand.u32 %v155, 4294901760
      %1818 = vmatprep.mubr.f32.mxu0 %v1817
      %v1819 = vand.u32 %v154, 4294901760
      %1820 = vmatmul.mubr.f32.gmra.mrb[0].mxu0 %v1819
      %v1821 = vpop.f32.mrb[0].mxu0
      %v1822 = vadd.f32 %v1613, %v1821
      %v1823 = vpop.f32.mrb[0].mxu0
      %v1824 = vand.u32 %v157, 4294901760
      %1825 = vmatprep.mubr.f32.mxu0 %v1824
      %v1826 = vand.u32 %v156, 4294901760
      %1827 = vmatmul.mubr.f32.gmra.mrb[0].mxu0 %v1826
      %v1828 = vpop.f32.mrb[0].mxu0
      %v1829 = vadd.f32 %v1620, %v1828
      %v1830 = vpop.f32.mrb[0].mxu0
      %v1831 = vand.u32 %v159, 4294901760
      %1832 = vmatprep.mubr.f32.mxu0 %v1831
      %v1833 = vand.u32 %v158, 4294901760
      %1834 = vmatmul.mubr.f32.gmra.mrb[0].mxu0 %v1833
      %v1835 = vpop.f32.mrb[0].mxu0
      %v1836 = vadd.f32 %v1627, %v1835
      %v1837 = vpop.f32.mrb[0].mxu0
      %v1838 = vand.u32 %v161, 4294901760
      %1839 = vmatprep.mubr.f32.mxu0 %v1838
      %v1840 = vand.u32 %v160, 4294901760
      %1841 = vmatmul.mubr.f32.gmra.mrb[0].mxu0 %v1840
      %v1842 = vpop.f32.mrb[0].mxu0
      %v1843 = vadd.f32 %v1634, %v1842
      %v1844 = vpop.f32.mrb[0].mxu0
      %v1845 = vand.u32 %v163, 4294901760
      %1846 = vmatprep.mubr.f32.mxu0 %v1845
      %v1847 = vand.u32 %v162, 4294901760
      %1848 = vmatmul.mubr.f32.gmra.mrb[0].mxu0 %v1847
      %v1849 = vpop.f32.mrb[0].mxu0
      %v1850 = vadd.f32 %v1641, %v1849
      %v1851 = vpop.f32.mrb[0].mxu0
      %v1852 = vand.u32 %v165, 4294901760
      %1853 = vmatprep.mubr.f32.mxu0 %v1852
      %v1854 = vand.u32 %v164, 4294901760
      %1855 = vmatmul.mubr.f32.gmra.mrb[0].mxu0 %v1854
      %v1856 = vpop.f32.mrb[0].mxu0
      %v1857 = vadd.f32 %v1648, %v1856
      %v1858 = vpop.f32.mrb[0].mxu0
      %v1859 = vand.u32 %v167, 4294901760
      %1860 = vmatprep.mubr.f32.mxu0 %v1859
      %v1861 = vand.u32 %v166, 4294901760
      %1862 = vmatmul.mubr.f32.gmra.mrb[0].mxu0 %v1861
      %v1863 = vpop.f32.mrb[0].mxu0
      %v1864 = vadd.f32 %v1655, %v1863
      %v1865 = vpop.f32.mrb[0].mxu0
      %v1866 = vand.u32 %v169, 4294901760
      %1867 = vmatprep.mubr.f32.mxu0 %v1866
      %v1868 = vand.u32 %v168, 4294901760
      %1869 = vmatmul.mubr.f32.gmra.mrb[0].mxu0 %v1868
      %v1870 = vpop.f32.mrb[0].mxu0
      %v1871 = vadd.f32 %v1662, %v1870
      %v1872 = vpop.f32.mrb[0].mxu0
      %v1873 = vand.u32 %v171, 4294901760
      %1874 = vmatprep.mubr.f32.mxu0 %v1873
      %v1875 = vand.u32 %v170, 4294901760
      %1876 = vmatmul.mubr.f32.gmra.mrb[0].mxu0 %v1875
      %v1877 = vpop.f32.mrb[0].mxu0
      %v1878 = vadd.f32 %v1669, %v1877
      %v1879 = vpop.f32.mrb[0].mxu0
      %v1880 = vand.u32 %v173, 4294901760
      %1881 = vmatprep.mubr.f32.mxu0 %v1880
      %v1882 = vand.u32 %v172, 4294901760
      %1883 = vmatmul.mubr.f32.gmra.mrb[0].mxu0 %v1882
      %v1884 = vpop.f32.mrb[0].mxu0
      %v1885 = vadd.f32 %v1676, %v1884
      %v1886 = vpop.f32.mrb[0].mxu0
      %v1887 = vand.u32 %v175, 4294901760
      %1888 = vmatprep.mubr.f32.mxu0 %v1887
      %v1889 = vand.u32 %v174, 4294901760
      %1890 = vmatmul.mubr.f32.gmra.mrb[0].mxu0 %v1889
      %v1891 = vpop.f32.mrb[0].mxu0
      %v1892 = vadd.f32 %v1683, %v1891
      %v1893 = vpop.f32.mrb[0].mxu0
      %v1894 = vand.u32 %v177, 4294901760
      %1895 = vmatprep.mubr.f32.mxu0 %v1894
      %v1896 = vand.u32 %v176, 4294901760
      %1897 = vmatmul.mubr.f32.gmra.mrb[0].mxu0 %v1896
      %v1898 = vpop.f32.mrb[0].mxu0
      %v1899 = vadd.f32 %v1690, %v1898
      %v1900 = vpop.f32.mrb[0].mxu0
      %v1901 = vand.u32 %v179, 4294901760
      %1902 = vmatprep.mubr.f32.mxu0 %v1901
      %v1903 = vand.u32 %v178, 4294901760
      %1904 = vmatmul.mubr.f32.gmra.mrb[0].mxu0 %v1903
      %v1905 = vpop.f32.mrb[0].mxu0
      %v1906 = vadd.f32 %v1697, %v1905
      %v1907 = vpop.f32.mrb[0].mxu0
      %v1908 = vand.u32 %v181, 4294901760
      %1909 = vmatprep.mubr.f32.mxu0 %v1908
      %v1910 = vand.u32 %v180, 4294901760
      %1911 = vmatmul.mubr.f32.gmra.mrb[0].mxu0 %v1910
      %v1912 = vpop.f32.mrb[0].mxu0
      %v1913 = vadd.f32 %v1704, %v1912
      %v1914 = vpop.f32.mrb[0].mxu0
      %1915 = vdwg.mxu0
      %vm1916 = vcmask 261120
      %1917 = vst.msk [vmem:[%s148] sm:$0xff] %vm1916, %v1808
      %1918 = vst.msk [vmem:[%s148 + $0x8] sm:$0xff] %vm1916, %v1815
      %1919 = vst.msk [vmem:[%s148 + $0x10] sm:$0xff] %vm1916, %v1822
      %1920 = vst.msk [vmem:[%s148 + $0x18] sm:$0xff] %vm1916, %v1829
      %1921 = vst.msk [vmem:[%s148 + $0x20] sm:$0xff] %vm1916, %v1836
      %1922 = vst.msk [vmem:[%s148 + $0x28] sm:$0xff] %vm1916, %v1843
      %1923 = vst.msk [vmem:[%s148 + $0x30] sm:$0xff] %vm1916, %v1850
      %1924 = vst.msk [vmem:[%s148 + $0x38] sm:$0xff] %vm1916, %v1857
      %1925 = vst.msk [vmem:[%s148 + $0x40] sm:$0xff] %vm1916, %v1864
      %1926 = vst.msk [vmem:[%s148 + $0x48] sm:$0xff] %vm1916, %v1871
      %1927 = vst.msk [vmem:[%s148 + $0x50] sm:$0xff] %vm1916, %v1878
      %1928 = vst.msk [vmem:[%s148 + $0x58] sm:$0xff] %vm1916, %v1885
      %1929 = vst.msk [vmem:[%s148 + $0x60] sm:$0xff] %vm1916, %v1892
      %1930 = vst.msk [vmem:[%s148 + $0x68] sm:$0xff] %vm1916, %v1899
      %1931 = vst.msk [vmem:[%s148 + $0x70] sm:$0xff] %vm1916, %v1906
      %1932 = vst.msk [vmem:[%s148 + $0x78] sm:$0xff] %vm1916, %v1913
      %s1933 = smul.u32 16, %s13
      %p1934 = scmp.lt.s32.totalorder %s1933, 63
      %s1935 = scalar_select %p1934, %s1933, 63
      %s1936 = smul.addr %s1935, 8
      %s1937 = scalar_lea.vmem %s2, %s1936
      // Predicated region
      $region29: #{fourier_forward.1} parent=27 // pred_check
        %p1938 = pneg %p78
      $region30: #{fourier_forward.1} parent=27 // pred_check_branch
        %1940 = sbr.rel (%p1938) target = $region32
      $region31: #{fourier_forward.1} parent=27 // pred_region
        %s1941 = smul.u32 16, %s13
      $region32: #{fourier_forward.1} parent=27 // pred_fallthru
        _
    $region28: #{fourier_forward.1} parent=5 // pred_fallthru
      _
    %p1942 = scmp.le.s32.totalorder 2, %s8
    // Predicated region
    $region33: #{fourier_forward.1} parent=5 // pred_check
      %p1943 = pneg %p1942
    $region34: #{fourier_forward.1} parent=5 // pred_check_branch
      %1945 = sbr.rel (%p1943) target = $region36
    $region35: #{fourier_forward.1} parent=5 // pred_region
      %s1946 = ssub.s32 %s8, 2
      // Predicated region
      $region37: #{fourier_forward.1} parent=35 // pred_check
        %p1947 = pneg %p84
      $region38: #{fourier_forward.1} parent=35 // pred_check_branch
        %1949 = sbr.rel (%p1947) target = $region40
      $region39: #{fourier_forward.1} parent=35 // pred_region
        %s1950 = smul.u32 16, %s14
        %p1951 = scmp.lt.s32.totalorder %s1950, 63
        %s1952 = scalar_select %p1951, %s1950, 63
        %s1953 = smul.addr %s1952, 8
        %s1954 = scalar_lea.vmem %s2, %s1953
      $region40: #{fourier_forward.1} parent=35 // pred_fallthru
        _
    $region36: #{fourier_forward.1} parent=5 // pred_fallthru
      _
  $region6: #{fourier_forward.1} parent=0 // loop_footer
    %s12 = sadd.s32 1, %s8
  $region7: #{fourier_forward.1} parent=0 // loop_footer_branch
    %7 = sbr.rel target = $region3
  $region8: #{fourier_forward.1} parent=0 // loop_exit
    _

</llo_original>
